<compile_context>
chip_gen: v7x
topology: tpu7x:2x2x1
jax: 0.10.0
libtpu: 0.0.40
codegen_flags: <defaults>
</compile_context>

<pallas_src>
import functools
import math

import jax
import jax.numpy as jnp
from jax.experimental import pallas as pl
from jax.experimental.pallas import tpu as pltpu


def _encoder_kernel(x_ref, w_in_ref, b_in_ref, w_out_ref,
                    w_ff1_ref, b_ff1_ref, w_ff2_ref, vecs_ref, o_ref,
                    *, num_heads, batch, eps):
    x = x_ref[...]                                    # (M, E) f32, M = S*B tokens
    M, E = x.shape
    H = num_heads
    hd = E // H

    # Fused QKV projection: one MXU op (weights pre-transposed, q pre-scaled).
    qkv = jnp.dot(x, w_in_ref[...], preferred_element_type=jnp.float32) + b_in_ref[...]

    # Stack heads into a single batched (H, M, hd) operand (leading-axis concat
    # of lane slices; no per-head matmuls, no lane-dim concatenate afterwards).
    def head_stack(base):
        return jnp.concatenate(
            [qkv[None, :, base + h * hd: base + (h + 1) * hd] for h in range(H)],
            axis=0)                                   # (H, M, hd)

    qh = head_stack(0)
    kh = head_stack(E)
    vh = head_stack(2 * E)

    # In-kernel additive attention bias: 0 for same-batch token pairs, -1e30
    # otherwise.  Under (s, b) row order, token t belongs to batch t % B, so
    # the softmax only ever mixes tokens of the same batch element.
    row_b = jax.lax.broadcasted_iota(jnp.int32, (M, M), 0) % batch
    col_b = jax.lax.broadcasted_iota(jnp.int32, (M, M), 1) % batch
    bias = jnp.where(row_b == col_b, 0.0, -1e30).astype(jnp.float32)

    # Batched attention over all heads at once.
    s = jnp.einsum('nqd,nkd->nqk', qh, kh,
                   preferred_element_type=jnp.float32)        # (H, M, M)
    s = s + bias                                      # broadcast over heads
    s = s - jnp.max(s, axis=-1, keepdims=True)
    p = jnp.exp(s)
    p = p * pl.reciprocal(jnp.sum(p, axis=-1, keepdims=True), approx=True)
    o = jnp.einsum('nqk,nkd->nqd', p, vh,
                   preferred_element_type=jnp.float32)        # (H, M, hd)

    # Output projection, accumulated per head block of the pre-transposed
    # out_proj weight (rows h*hd:(h+1)*hd multiply head h's output).
    w_out = w_out_ref[...]                            # (E, E)
    attn = jnp.dot(o[0], w_out[0:hd, :], preferred_element_type=jnp.float32)
    for h in range(1, H):
        attn = attn + jnp.dot(o[h], w_out[h * hd:(h + 1) * hd, :],
                              preferred_element_type=jnp.float32)

    b_out = vecs_ref[0:1, :]
    b_ff2 = vecs_ref[1:2, :]
    ln1_g, ln1_b = vecs_ref[2:3, :], vecs_ref[3:4, :]
    ln2_g, ln2_b = vecs_ref[4:5, :], vecs_ref[5:6, :]

    attn = attn + b_out

    def layer_norm(y, g, b):
        mu = jnp.mean(y, axis=-1, keepdims=True)
        var = jnp.mean(jnp.square(y - mu), axis=-1, keepdims=True)
        return (y - mu) * jax.lax.rsqrt(var + eps) * g + b

    # Residual + LayerNorm 1.
    y1 = layer_norm(x + attn, ln1_g, ln1_b)

    # Feed-forward: linear_2(relu(linear_1(y1))) with pre-transposed weights.
    h1 = jnp.dot(y1, w_ff1_ref[...], preferred_element_type=jnp.float32) + b_ff1_ref[...]
    h1 = jnp.maximum(h1, 0.0)
    ff = jnp.dot(h1, w_ff2_ref[...], preferred_element_type=jnp.float32) + b_ff2

    # Residual + LayerNorm 2.
    o_ref[...] = layer_norm(y1 + ff, ln2_g, ln2_b).astype(o_ref.dtype)


def pack_params(p, num_heads):
    """Host-side, one-time weight re-layout into the kernel-friendly format."""
    E = p["out_proj_w"].shape[0]
    FF = p["linear_1_w"].shape[0]
    hd = E // num_heads
    scale = 1.0 / math.sqrt(hd)

    # Fold the 1/sqrt(hd) query scale into the q columns of the fused weight/bias.
    qscale = jnp.concatenate([jnp.full((1, E), scale, jnp.float32),
                              jnp.ones((1, 2 * E), jnp.float32)], axis=1)   # (1, 3E)
    w_in = jnp.transpose(p["in_proj_w"]) * qscale                           # (E, 3E)
    b_in = p["in_proj_b"].reshape(1, 3 * E) * qscale                        # (1, 3E)

    vecs = jnp.stack([p["out_proj_b"], p["linear_2_b"],
                      p["ln1_g"], p["ln1_b"], p["ln2_g"], p["ln2_b"]], axis=0)  # (6, E)

    return {
        "w_in": w_in,
        "b_in": b_in,
        "w_out": jnp.transpose(p["out_proj_w"]),      # (E, E)
        "w_ff1": jnp.transpose(p["linear_1_w"]),      # (E, FF)
        "b_ff1": p["linear_1_b"].reshape(1, FF),      # (1, FF)
        "w_ff2": jnp.transpose(p["linear_2_w"]),      # (FF, E)
        "vecs": vecs,                                 # (6, E)
    }


def transformer_encoder(x_sbe, packed, *, num_heads, eps=1e-5):
    """x_sbe: (S, B, E) float32 — PyTorch MultiheadAttention default layout."""
    S, B, E = x_sbe.shape
    M = S * B
    FF = packed["w_ff1"].shape[1]

    # Free, contiguous reshape (NOT a transpose): tokens in (s, b) row order.
    x2 = x_sbe.reshape(M, E)

    def full_spec(shape):
        return pl.BlockSpec(shape, lambda i, _n=len(shape): (0,) * _n)

    kernel = functools.partial(_encoder_kernel, num_heads=num_heads, batch=B, eps=eps)

    out = pl.pallas_call(
        kernel,
        out_shape=jax.ShapeDtypeStruct((M, E), x_sbe.dtype),
        grid=(1,),
        in_specs=[
            full_spec((M, E)),        # flattened tokens
            full_spec((E, 3 * E)),    # fused, pre-transposed QKV weight (q scaled)
            full_spec((1, 3 * E)),    # fused QKV bias (q scaled)
            full_spec((E, E)),        # out_proj weight (pre-transposed)
            full_spec((E, FF)),       # linear_1 weight (pre-transposed)
            full_spec((1, FF)),       # linear_1 bias
            full_spec((FF, E)),       # linear_2 weight (pre-transposed)
            full_spec((6, E)),        # packed [out_b, ff2_b, ln1_g, ln1_b, ln2_g, ln2_b]
        ],
        out_specs=full_spec((M, E)),
        compiler_params=pltpu.CompilerParams(dimension_semantics=("arbitrary",)),
    )(x2, packed["w_in"], packed["b_in"], packed["w_out"],
      packed["w_ff1"], packed["b_ff1"], packed["w_ff2"], packed["vecs"])

    return out.reshape(S, B, E)                       # free reshape back to (S, B, E)


def _ref_forward(x_sbe, p, num_heads, eps=1e-5):
    """Pure-JAX reference mirroring torch semantics (for a sanity check)."""
    S, B, E = x_sbe.shape
    hd = E // num_heads
    x = jnp.transpose(x_sbe, (1, 0, 2))               # (B, S, E)
    w_in, b_in = p["in_proj_w"], p["in_proj_b"]
    q = x @ w_in[:E].T + b_in[:E]
    k = x @ w_in[E:2 * E].T + b_in[E:2 * E]
    v = x @ w_in[2 * E:].T + b_in[2 * E:]

    def split(t):  # (B, S, E) -> (B, H, S, hd)
        return t.reshape(B, S, num_heads, hd).transpose(0, 2, 1, 3)

    qh, kh, vh = split(q), split(k), split(v)
    s = jnp.einsum("bhqd,bhkd->bhqk", qh / math.sqrt(hd), kh)
    pw = jax.nn.softmax(s, axis=-1)
    o = jnp.einsum("bhqk,bhkd->bhqd", pw, vh).transpose(0, 2, 1, 3).reshape(B, S, E)
    attn = o @ p["out_proj_w"].T + p["out_proj_b"]

    def ln(y, g, b):
        mu = y.mean(-1, keepdims=True)
        var = ((y - mu) ** 2).mean(-1, keepdims=True)
        return (y - mu) / jnp.sqrt(var + eps) * g + b

    y1 = ln(x + attn, p["ln1_g"], p["ln1_b"])
    ff = jnp.maximum(y1 @ p["linear_1_w"].T + p["linear_1_b"], 0.0) @ p["linear_2_w"].T + p["linear_2_b"]
    y2 = ln(y1 + ff, p["ln2_g"], p["ln2_b"])
    return jnp.transpose(y2, (1, 0, 2))


def init_params(key, embed_dim, feedforward_dim):
    ks = jax.random.split(key, 6)
    f32 = jnp.float32
    se = 1.0 / math.sqrt(embed_dim)
    sf = 1.0 / math.sqrt(feedforward_dim)
    return {
        "in_proj_w": jax.random.normal(ks[0], (3 * embed_dim, embed_dim), f32) * se,
        "in_proj_b": jax.random.normal(ks[1], (3 * embed_dim,), f32) * 0.02,
        "out_proj_w": jax.random.normal(ks[2], (embed_dim, embed_dim), f32) * se,
        "out_proj_b": jnp.zeros((embed_dim,), f32),
        "linear_1_w": jax.random.normal(ks[3], (feedforward_dim, embed_dim), f32) * se,
        "linear_1_b": jnp.zeros((feedforward_dim,), f32),
        "linear_2_w": jax.random.normal(ks[4], (embed_dim, feedforward_dim), f32) * sf,
        "linear_2_b": jnp.zeros((embed_dim,), f32),
        "ln1_g": jnp.ones((embed_dim,), f32),
        "ln1_b": jnp.zeros((embed_dim,), f32),
        "ln2_g": jnp.ones((embed_dim,), f32),
        "ln2_b": jnp.zeros((embed_dim,), f32),
    }


if __name__ == "__main__":
    SEQ, BATCH, EMBED, HEADS, FFD = 8, 2, 32, 4, 64   # dropout=0.0 (identity at eval)

    key = jax.random.PRNGKey(0)
    k_x, k_p = jax.random.split(key)
    x = jax.random.normal(k_x, (SEQ, BATCH, EMBED), jnp.float32)
    params = init_params(k_p, EMBED, FFD)
    packed = pack_params(params, HEADS)               # one-time host-side re-layout

    out = transformer_encoder(x, packed, num_heads=HEADS)
    out = jax.block_until_ready(out)

    ref = _ref_forward(x, params, HEADS)
    assert out.shape == (SEQ, BATCH, EMBED)
    # 2e-3 tolerance: the softmax denominator uses the EUP approximate reciprocal.
    assert jnp.allclose(out, ref, atol=2e-3, rtol=2e-3), "Pallas output mismatch vs JAX reference"

    print("KERNEL_OK")
</pallas_src>

<mosaic_0001>
module attributes {stable_mosaic.version = 11 : i64} {
  func.func @_encoder_kernel(%arg0: i32, %arg1: memref<16x32xf32, #tpu.memory_space<vmem>>, %arg2: memref<32x96xf32, #tpu.memory_space<vmem>>, %arg3: memref<1x96xf32, #tpu.memory_space<vmem>>, %arg4: memref<32x32xf32, #tpu.memory_space<vmem>>, %arg5: memref<32x64xf32, #tpu.memory_space<vmem>>, %arg6: memref<1x64xf32, #tpu.memory_space<vmem>>, %arg7: memref<64x32xf32, #tpu.memory_space<vmem>>, %arg8: memref<6x32xf32, #tpu.memory_space<vmem>>, %arg9: memref<16x32xf32, #tpu.memory_space<vmem>>) attributes {dimension_semantics = [#tpu.dimension_semantics<arbitrary>], iteration_bounds = array<i64: 1>, scalar_prefetch = 0 : i64, scratch_operands = 0 : i64, tpu.core_type = #tpu.core_type<tc>, window_params = [{pipeline_mode = #tpu.pipeline_mode<synchronous>, transform_indices = @transform_0, window_bounds = array<i64: 16, 32>}, {pipeline_mode = #tpu.pipeline_mode<synchronous>, transform_indices = @transform_1, window_bounds = array<i64: 32, 96>}, {pipeline_mode = #tpu.pipeline_mode<synchronous>, transform_indices = @transform_2, window_bounds = array<i64: 1, 96>}, {pipeline_mode = #tpu.pipeline_mode<synchronous>, transform_indices = @transform_3, window_bounds = array<i64: 32, 32>}, {pipeline_mode = #tpu.pipeline_mode<synchronous>, transform_indices = @transform_4, window_bounds = array<i64: 32, 64>}, {pipeline_mode = #tpu.pipeline_mode<synchronous>, transform_indices = @transform_5, window_bounds = array<i64: 1, 64>}, {pipeline_mode = #tpu.pipeline_mode<synchronous>, transform_indices = @transform_6, window_bounds = array<i64: 64, 32>}, {pipeline_mode = #tpu.pipeline_mode<synchronous>, transform_indices = @transform_7, window_bounds = array<i64: 6, 32>}, {pipeline_mode = #tpu.pipeline_mode<synchronous>, transform_indices = @transform_8, window_bounds = array<i64: 16, 32>}]} {
    %c0 = arith.constant 0 : index
    %c0_0 = arith.constant 0 : index
    %0 = vector.load %arg1[%c0, %c0_0] : memref<16x32xf32, #tpu.memory_space<vmem>>, vector<16x32xf32>
    %c0_1 = arith.constant 0 : index
    %c0_2 = arith.constant 0 : index
    %1 = vector.load %arg2[%c0_1, %c0_2] : memref<32x96xf32, #tpu.memory_space<vmem>>, vector<32x96xf32>
    %cst = arith.constant dense<0.000000e+00> : vector<16x96xf32>
    %2 = tpu.matmul %0, %1, %cst {dimension_numbers = #tpu.dot_dimension_numbers<[1], [0], [0], [1], [0, 0, 1, 1], [], []>} : vector<16x32xf32>, vector<32x96xf32>, vector<16x96xf32> -> vector<16x96xf32>
    %c0_3 = arith.constant 0 : index
    %c0_4 = arith.constant 0 : index
    %3 = vector.load %arg3[%c0_3, %c0_4] : memref<1x96xf32, #tpu.memory_space<vmem>>, vector<1x96xf32>
    %4 = vector.broadcast %3 : vector<1x96xf32> to vector<16x96xf32>
    %5 = arith.addf %2, %4 : vector<16x96xf32>
    %6 = vector.extract_strided_slice %5 {offsets = [0, 0], sizes = [16, 8], strides = [1, 1]} : vector<16x96xf32> to vector<16x8xf32>
    %7 = vector.shape_cast %6 : vector<16x8xf32> to vector<1x16x8xf32>
    %8 = vector.extract_strided_slice %5 {offsets = [0, 8], sizes = [16, 8], strides = [1, 1]} : vector<16x96xf32> to vector<16x8xf32>
    %9 = vector.shape_cast %8 : vector<16x8xf32> to vector<1x16x8xf32>
    %10 = vector.extract_strided_slice %5 {offsets = [0, 16], sizes = [16, 8], strides = [1, 1]} : vector<16x96xf32> to vector<16x8xf32>
    %11 = vector.shape_cast %10 : vector<16x8xf32> to vector<1x16x8xf32>
    %12 = vector.extract_strided_slice %5 {offsets = [0, 24], sizes = [16, 8], strides = [1, 1]} : vector<16x96xf32> to vector<16x8xf32>
    %13 = vector.shape_cast %12 : vector<16x8xf32> to vector<1x16x8xf32>
    %14 = tpu.concatenate %7, %9, %11, %13 in 0 : vector<1x16x8xf32>, vector<1x16x8xf32>, vector<1x16x8xf32>, vector<1x16x8xf32> -> vector<4x16x8xf32>
    %15 = vector.extract_strided_slice %5 {offsets = [0, 32], sizes = [16, 8], strides = [1, 1]} : vector<16x96xf32> to vector<16x8xf32>
    %16 = vector.shape_cast %15 : vector<16x8xf32> to vector<1x16x8xf32>
    %17 = vector.extract_strided_slice %5 {offsets = [0, 40], sizes = [16, 8], strides = [1, 1]} : vector<16x96xf32> to vector<16x8xf32>
    %18 = vector.shape_cast %17 : vector<16x8xf32> to vector<1x16x8xf32>
    %19 = vector.extract_strided_slice %5 {offsets = [0, 48], sizes = [16, 8], strides = [1, 1]} : vector<16x96xf32> to vector<16x8xf32>
    %20 = vector.shape_cast %19 : vector<16x8xf32> to vector<1x16x8xf32>
    %21 = vector.extract_strided_slice %5 {offsets = [0, 56], sizes = [16, 8], strides = [1, 1]} : vector<16x96xf32> to vector<16x8xf32>
    %22 = vector.shape_cast %21 : vector<16x8xf32> to vector<1x16x8xf32>
    %23 = tpu.concatenate %16, %18, %20, %22 in 0 : vector<1x16x8xf32>, vector<1x16x8xf32>, vector<1x16x8xf32>, vector<1x16x8xf32> -> vector<4x16x8xf32>
    %24 = vector.extract_strided_slice %5 {offsets = [0, 64], sizes = [16, 8], strides = [1, 1]} : vector<16x96xf32> to vector<16x8xf32>
    %25 = vector.shape_cast %24 : vector<16x8xf32> to vector<1x16x8xf32>
    %26 = vector.extract_strided_slice %5 {offsets = [0, 72], sizes = [16, 8], strides = [1, 1]} : vector<16x96xf32> to vector<16x8xf32>
    %27 = vector.shape_cast %26 : vector<16x8xf32> to vector<1x16x8xf32>
    %28 = vector.extract_strided_slice %5 {offsets = [0, 80], sizes = [16, 8], strides = [1, 1]} : vector<16x96xf32> to vector<16x8xf32>
    %29 = vector.shape_cast %28 : vector<16x8xf32> to vector<1x16x8xf32>
    %30 = vector.extract_strided_slice %5 {offsets = [0, 88], sizes = [16, 8], strides = [1, 1]} : vector<16x96xf32> to vector<16x8xf32>
    %31 = vector.shape_cast %30 : vector<16x8xf32> to vector<1x16x8xf32>
    %32 = tpu.concatenate %25, %27, %29, %31 in 0 : vector<1x16x8xf32>, vector<1x16x8xf32>, vector<1x16x8xf32>, vector<1x16x8xf32> -> vector<4x16x8xf32>
    %33 = tpu.iota {dimensions = array<i32: 0>} : vector<16x16xi32>
    %c2_i32 = arith.constant 2 : i32
    %c0_i32 = arith.constant 0 : i32
    %34 = arith.cmpi eq, %c2_i32, %c0_i32 : i32
    %c1_i32 = arith.constant 1 : i32
    %35 = arith.select %34, %c1_i32, %c2_i32 : i32
    %36 = vector.broadcast %35 : i32 to vector<16x16xi32>
    %37 = arith.remsi %33, %36 : vector<16x16xi32>
    %c0_i32_5 = arith.constant 0 : i32
    %38 = vector.broadcast %c0_i32_5 : i32 to vector<16x16xi32>
    %39 = arith.cmpi ne, %37, %38 : vector<16x16xi32>
    %c0_i32_6 = arith.constant 0 : i32
    %40 = vector.broadcast %c0_i32_6 : i32 to vector<16x16xi32>
    %41 = arith.cmpi slt, %37, %40 : vector<16x16xi32>
    %c0_i32_7 = arith.constant 0 : i32
    %42 = arith.cmpi slt, %35, %c0_i32_7 : i32
    %43 = vector.broadcast %42 : i1 to vector<16x16xi1>
    %44 = vector.broadcast %43 : vector<16x16xi1> to vector<16x16xi1>
    %45 = arith.xori %41, %44 : vector<16x16xi1>
    %46 = arith.andi %45, %39 : vector<16x16xi1>
    %47 = vector.broadcast %35 : i32 to vector<16x16xi32>
    %48 = arith.addi %37, %47 : vector<16x16xi32>
    %49 = arith.select %46, %48, %37 : vector<16x16xi1>, vector<16x16xi32>
    %50 = tpu.iota {dimensions = array<i32: 1>} : vector<16x16xi32>
    %c2_i32_8 = arith.constant 2 : i32
    %c0_i32_9 = arith.constant 0 : i32
    %51 = arith.cmpi eq, %c2_i32_8, %c0_i32_9 : i32
    %c1_i32_10 = arith.constant 1 : i32
    %52 = arith.select %51, %c1_i32_10, %c2_i32_8 : i32
    %53 = vector.broadcast %52 : i32 to vector<16x16xi32>
    %54 = arith.remsi %50, %53 : vector<16x16xi32>
    %c0_i32_11 = arith.constant 0 : i32
    %55 = vector.broadcast %c0_i32_11 : i32 to vector<16x16xi32>
    %56 = arith.cmpi ne, %54, %55 : vector<16x16xi32>
    %c0_i32_12 = arith.constant 0 : i32
    %57 = vector.broadcast %c0_i32_12 : i32 to vector<16x16xi32>
    %58 = arith.cmpi slt, %54, %57 : vector<16x16xi32>
    %c0_i32_13 = arith.constant 0 : i32
    %59 = arith.cmpi slt, %52, %c0_i32_13 : i32
    %60 = vector.broadcast %59 : i1 to vector<16x16xi1>
    %61 = vector.broadcast %60 : vector<16x16xi1> to vector<16x16xi1>
    %62 = arith.xori %58, %61 : vector<16x16xi1>
    %63 = arith.andi %62, %56 : vector<16x16xi1>
    %64 = vector.broadcast %52 : i32 to vector<16x16xi32>
    %65 = arith.addi %54, %64 : vector<16x16xi32>
    %66 = arith.select %63, %65, %54 : vector<16x16xi1>, vector<16x16xi32>
    %67 = arith.cmpi eq, %49, %66 : vector<16x16xi32>
    %cst_14 = arith.constant 0.000000e+00 : f32
    %cst_15 = arith.constant -1.000000e+30 : f32
    %68 = vector.broadcast %cst_14 : f32 to vector<16x16xf32>
    %69 = vector.broadcast %cst_15 : f32 to vector<16x16xf32>
    %70 = arith.select %67, %68, %69 : vector<16x16xi1>, vector<16x16xf32>
    "tpu.trace_start"() <{level = 10 : i32, message = "nqd,nkd->nqk"}> : () -> ()
    %cst_16 = arith.constant dense<0.000000e+00> : vector<4x16x16xf32>
    %71 = tpu.matmul %14, %23, %cst_16 {dimension_numbers = #tpu.dot_dimension_numbers<[2], [2], [1], [1], [0, 0, 0, 1, 1, 1], [0], [0]>} : vector<4x16x8xf32>, vector<4x16x8xf32>, vector<4x16x16xf32> -> vector<4x16x16xf32>
    "tpu.trace_stop"() : () -> ()
    %72 = vector.shape_cast %70 : vector<16x16xf32> to vector<1x16x16xf32>
    %73 = vector.broadcast %72 : vector<1x16x16xf32> to vector<4x16x16xf32>
    %74 = arith.addf %71, %73 : vector<4x16x16xf32>
    %cst_17 = arith.constant dense<0xFF800000> : vector<4x16xf32>
    %75 = vector.multi_reduction <maximumf>, %74, %cst_17 [2] : vector<4x16x16xf32> to vector<4x16xf32>
    %76 = vector.shape_cast %75 : vector<4x16xf32> to vector<4x16x1xf32>
    %77 = vector.broadcast %76 : vector<4x16x1xf32> to vector<4x16x16xf32>
    %78 = arith.subf %74, %77 : vector<4x16x16xf32>
    %79 = math.exp %78 : vector<4x16x16xf32>
    %cst_18 = arith.constant dense<0.000000e+00> : vector<4x16xf32>
    %80 = vector.multi_reduction <add>, %79, %cst_18 [2] : vector<4x16x16xf32> to vector<4x16xf32>
    %81 = vector.shape_cast %80 : vector<4x16xf32> to vector<4x16x1xf32>
    %82 = tpu.reciprocal %81 {approx = true} : vector<4x16x1xf32> -> vector<4x16x1xf32>
    %83 = vector.broadcast %82 : vector<4x16x1xf32> to vector<4x16x16xf32>
    %84 = arith.mulf %79, %83 : vector<4x16x16xf32>
    "tpu.trace_start"() <{level = 10 : i32, message = "nqk,nkd->nqd"}> : () -> ()
    %cst_19 = arith.constant dense<0.000000e+00> : vector<4x16x8xf32>
    %85 = tpu.matmul %84, %32, %cst_19 {dimension_numbers = #tpu.dot_dimension_numbers<[2], [1], [1], [2], [0, 0, 0, 1, 1, 2], [0], [0]>} : vector<4x16x16xf32>, vector<4x16x8xf32>, vector<4x16x8xf32> -> vector<4x16x8xf32>
    "tpu.trace_stop"() : () -> ()
    %c0_20 = arith.constant 0 : index
    %c0_21 = arith.constant 0 : index
    %86 = vector.load %arg4[%c0_20, %c0_21] : memref<32x32xf32, #tpu.memory_space<vmem>>, vector<32x32xf32>
    %87 = vector.extract_strided_slice %85 {offsets = [0, 0, 0], sizes = [1, 16, 8], strides = [1, 1, 1]} : vector<4x16x8xf32> to vector<1x16x8xf32>
    %88 = vector.shape_cast %87 : vector<1x16x8xf32> to vector<16x8xf32>
    %89 = vector.extract_strided_slice %86 {offsets = [0, 0], sizes = [8, 32], strides = [1, 1]} : vector<32x32xf32> to vector<8x32xf32>
    %cst_22 = arith.constant dense<0.000000e+00> : vector<16x32xf32>
    %90 = tpu.matmul %88, %89, %cst_22 {dimension_numbers = #tpu.dot_dimension_numbers<[1], [0], [0], [1], [0, 0, 1, 1], [], []>} : vector<16x8xf32>, vector<8x32xf32>, vector<16x32xf32> -> vector<16x32xf32>
    %91 = vector.extract_strided_slice %85 {offsets = [1, 0, 0], sizes = [1, 16, 8], strides = [1, 1, 1]} : vector<4x16x8xf32> to vector<1x16x8xf32>
    %92 = vector.shape_cast %91 : vector<1x16x8xf32> to vector<16x8xf32>
    %93 = vector.extract_strided_slice %86 {offsets = [8, 0], sizes = [8, 32], strides = [1, 1]} : vector<32x32xf32> to vector<8x32xf32>
    %cst_23 = arith.constant dense<0.000000e+00> : vector<16x32xf32>
    %94 = tpu.matmul %92, %93, %cst_23 {dimension_numbers = #tpu.dot_dimension_numbers<[1], [0], [0], [1], [0, 0, 1, 1], [], []>} : vector<16x8xf32>, vector<8x32xf32>, vector<16x32xf32> -> vector<16x32xf32>
    %95 = arith.addf %90, %94 : vector<16x32xf32>
    %96 = vector.extract_strided_slice %85 {offsets = [2, 0, 0], sizes = [1, 16, 8], strides = [1, 1, 1]} : vector<4x16x8xf32> to vector<1x16x8xf32>
    %97 = vector.shape_cast %96 : vector<1x16x8xf32> to vector<16x8xf32>
    %98 = vector.extract_strided_slice %86 {offsets = [16, 0], sizes = [8, 32], strides = [1, 1]} : vector<32x32xf32> to vector<8x32xf32>
    %cst_24 = arith.constant dense<0.000000e+00> : vector<16x32xf32>
    %99 = tpu.matmul %97, %98, %cst_24 {dimension_numbers = #tpu.dot_dimension_numbers<[1], [0], [0], [1], [0, 0, 1, 1], [], []>} : vector<16x8xf32>, vector<8x32xf32>, vector<16x32xf32> -> vector<16x32xf32>
    %100 = arith.addf %95, %99 : vector<16x32xf32>
    %101 = vector.extract_strided_slice %85 {offsets = [3, 0, 0], sizes = [1, 16, 8], strides = [1, 1, 1]} : vector<4x16x8xf32> to vector<1x16x8xf32>
    %102 = vector.shape_cast %101 : vector<1x16x8xf32> to vector<16x8xf32>
    %103 = vector.extract_strided_slice %86 {offsets = [24, 0], sizes = [8, 32], strides = [1, 1]} : vector<32x32xf32> to vector<8x32xf32>
    %cst_25 = arith.constant dense<0.000000e+00> : vector<16x32xf32>
    %104 = tpu.matmul %102, %103, %cst_25 {dimension_numbers = #tpu.dot_dimension_numbers<[1], [0], [0], [1], [0, 0, 1, 1], [], []>} : vector<16x8xf32>, vector<8x32xf32>, vector<16x32xf32> -> vector<16x32xf32>
    %105 = arith.addf %100, %104 : vector<16x32xf32>
    %c0_26 = arith.constant 0 : index
    %c0_27 = arith.constant 0 : index
    %106 = vector.load %arg8[%c0_26, %c0_27] : memref<6x32xf32, #tpu.memory_space<vmem>>, vector<1x32xf32>
    %c1 = arith.constant 1 : index
    %c0_28 = arith.constant 0 : index
    %107 = vector.load %arg8[%c1, %c0_28] : memref<6x32xf32, #tpu.memory_space<vmem>>, vector<1x32xf32>
    %c2 = arith.constant 2 : index
    %c0_29 = arith.constant 0 : index
    %108 = vector.load %arg8[%c2, %c0_29] : memref<6x32xf32, #tpu.memory_space<vmem>>, vector<1x32xf32>
    %c3 = arith.constant 3 : index
    %c0_30 = arith.constant 0 : index
    %109 = vector.load %arg8[%c3, %c0_30] : memref<6x32xf32, #tpu.memory_space<vmem>>, vector<1x32xf32>
    %c4 = arith.constant 4 : index
    %c0_31 = arith.constant 0 : index
    %110 = vector.load %arg8[%c4, %c0_31] : memref<6x32xf32, #tpu.memory_space<vmem>>, vector<1x32xf32>
    %c5 = arith.constant 5 : index
    %c0_32 = arith.constant 0 : index
    %111 = vector.load %arg8[%c5, %c0_32] : memref<6x32xf32, #tpu.memory_space<vmem>>, vector<1x32xf32>
    %112 = vector.broadcast %106 : vector<1x32xf32> to vector<16x32xf32>
    %113 = arith.addf %105, %112 : vector<16x32xf32>
    %114 = arith.addf %0, %113 : vector<16x32xf32>
    %cst_33 = arith.constant dense<0.000000e+00> : vector<16xf32>
    %115 = vector.multi_reduction <add>, %114, %cst_33 [1] : vector<16x32xf32> to vector<16xf32>
    %116 = vector.shape_cast %115 : vector<16xf32> to vector<16x1xf32>
    %cst_34 = arith.constant 3.200000e+01 : f32
    %117 = vector.broadcast %cst_34 : f32 to vector<16x1xf32>
    %118 = arith.divf %116, %117 : vector<16x1xf32>
    %119 = vector.broadcast %118 : vector<16x1xf32> to vector<16x32xf32>
    %120 = arith.subf %114, %119 : vector<16x32xf32>
    %121 = arith.mulf %120, %120 : vector<16x32xf32>
    %cst_35 = arith.constant dense<0.000000e+00> : vector<16xf32>
    %122 = vector.multi_reduction <add>, %121, %cst_35 [1] : vector<16x32xf32> to vector<16xf32>
    %123 = vector.shape_cast %122 : vector<16xf32> to vector<16x1xf32>
    %cst_36 = arith.constant 3.200000e+01 : f32
    %124 = vector.broadcast %cst_36 : f32 to vector<16x1xf32>
    %125 = arith.divf %123, %124 : vector<16x1xf32>
    %126 = vector.broadcast %118 : vector<16x1xf32> to vector<16x32xf32>
    %127 = arith.subf %114, %126 : vector<16x32xf32>
    %cst_37 = arith.constant 9.99999974E-6 : f32
    %128 = vector.broadcast %cst_37 : f32 to vector<16x1xf32>
    %129 = arith.addf %125, %128 : vector<16x1xf32>
    %130 = math.rsqrt %129 : vector<16x1xf32>
    %131 = vector.broadcast %130 : vector<16x1xf32> to vector<16x32xf32>
    %132 = arith.mulf %127, %131 : vector<16x32xf32>
    %133 = vector.broadcast %108 : vector<1x32xf32> to vector<16x32xf32>
    %134 = arith.mulf %132, %133 : vector<16x32xf32>
    %135 = vector.broadcast %109 : vector<1x32xf32> to vector<16x32xf32>
    %136 = arith.addf %134, %135 : vector<16x32xf32>
    %c0_38 = arith.constant 0 : index
    %c0_39 = arith.constant 0 : index
    %137 = vector.load %arg5[%c0_38, %c0_39] : memref<32x64xf32, #tpu.memory_space<vmem>>, vector<32x64xf32>
    %cst_40 = arith.constant dense<0.000000e+00> : vector<16x64xf32>
    %138 = tpu.matmul %136, %137, %cst_40 {dimension_numbers = #tpu.dot_dimension_numbers<[1], [0], [0], [1], [0, 0, 1, 1], [], []>} : vector<16x32xf32>, vector<32x64xf32>, vector<16x64xf32> -> vector<16x64xf32>
    %c0_41 = arith.constant 0 : index
    %c0_42 = arith.constant 0 : index
    %139 = vector.load %arg6[%c0_41, %c0_42] : memref<1x64xf32, #tpu.memory_space<vmem>>, vector<1x64xf32>
    %140 = vector.broadcast %139 : vector<1x64xf32> to vector<16x64xf32>
    %141 = arith.addf %138, %140 : vector<16x64xf32>
    %cst_43 = arith.constant 0.000000e+00 : f32
    %142 = vector.broadcast %cst_43 : f32 to vector<16x64xf32>
    %143 = arith.maximumf %141, %142 : vector<16x64xf32>
    %c0_44 = arith.constant 0 : index
    %c0_45 = arith.constant 0 : index
    %144 = vector.load %arg7[%c0_44, %c0_45] : memref<64x32xf32, #tpu.memory_space<vmem>>, vector<64x32xf32>
    %cst_46 = arith.constant dense<0.000000e+00> : vector<16x32xf32>
    %145 = tpu.matmul %143, %144, %cst_46 {dimension_numbers = #tpu.dot_dimension_numbers<[1], [0], [0], [1], [0, 0, 1, 1], [], []>} : vector<16x64xf32>, vector<64x32xf32>, vector<16x32xf32> -> vector<16x32xf32>
    %146 = vector.broadcast %107 : vector<1x32xf32> to vector<16x32xf32>
    %147 = arith.addf %145, %146 : vector<16x32xf32>
    %148 = arith.addf %136, %147 : vector<16x32xf32>
    %cst_47 = arith.constant dense<0.000000e+00> : vector<16xf32>
    %149 = vector.multi_reduction <add>, %148, %cst_47 [1] : vector<16x32xf32> to vector<16xf32>
    %150 = vector.shape_cast %149 : vector<16xf32> to vector<16x1xf32>
    %cst_48 = arith.constant 3.200000e+01 : f32
    %151 = vector.broadcast %cst_48 : f32 to vector<16x1xf32>
    %152 = arith.divf %150, %151 : vector<16x1xf32>
    %153 = vector.broadcast %152 : vector<16x1xf32> to vector<16x32xf32>
    %154 = arith.subf %148, %153 : vector<16x32xf32>
    %155 = arith.mulf %154, %154 : vector<16x32xf32>
    %cst_49 = arith.constant dense<0.000000e+00> : vector<16xf32>
    %156 = vector.multi_reduction <add>, %155, %cst_49 [1] : vector<16x32xf32> to vector<16xf32>
    %157 = vector.shape_cast %156 : vector<16xf32> to vector<16x1xf32>
    %cst_50 = arith.constant 3.200000e+01 : f32
    %158 = vector.broadcast %cst_50 : f32 to vector<16x1xf32>
    %159 = arith.divf %157, %158 : vector<16x1xf32>
    %160 = vector.broadcast %152 : vector<16x1xf32> to vector<16x32xf32>
    %161 = arith.subf %148, %160 : vector<16x32xf32>
    %cst_51 = arith.constant 9.99999974E-6 : f32
    %162 = vector.broadcast %cst_51 : f32 to vector<16x1xf32>
    %163 = arith.addf %159, %162 : vector<16x1xf32>
    %164 = math.rsqrt %163 : vector<16x1xf32>
    %165 = vector.broadcast %164 : vector<16x1xf32> to vector<16x32xf32>
    %166 = arith.mulf %161, %165 : vector<16x32xf32>
    %167 = vector.broadcast %110 : vector<1x32xf32> to vector<16x32xf32>
    %168 = arith.mulf %166, %167 : vector<16x32xf32>
    %169 = vector.broadcast %111 : vector<1x32xf32> to vector<16x32xf32>
    %170 = arith.addf %168, %169 : vector<16x32xf32>
    %c0_52 = arith.constant 0 : index
    %c0_53 = arith.constant 0 : index
    %171 = vector.load %arg9[%c0_52, %c0_53] : memref<16x32xf32, #tpu.memory_space<vmem>>, vector<16x32xf32>
    tpu.vector_store %arg9[%c0_52, %c0_53], %170 {strides = array<i32>} : memref<16x32xf32, #tpu.memory_space<vmem>>, vector<16x32xf32>,
    return
  }
  func.func @transform_0(%arg0: i32) -> (i32, i32) {
    %c0_i32 = arith.constant 0 : i32
    %c0_i32_0 = arith.constant 0 : i32
    %c0_i32_1 = arith.constant 0 : i32
    return %c0_i32, %c0_i32_0 : i32, i32
  }
  func.func @transform_1(%arg0: i32) -> (i32, i32) {
    %c0_i32 = arith.constant 0 : i32
    %c0_i32_0 = arith.constant 0 : i32
    %c0_i32_1 = arith.constant 0 : i32
    return %c0_i32, %c0_i32_0 : i32, i32
  }
  func.func @transform_2(%arg0: i32) -> (i32, i32) {
    %c0_i32 = arith.constant 0 : i32
    %c0_i32_0 = arith.constant 0 : i32
    %c0_i32_1 = arith.constant 0 : i32
    return %c0_i32, %c0_i32_0 : i32, i32
  }
  func.func @transform_3(%arg0: i32) -> (i32, i32) {
    %c0_i32 = arith.constant 0 : i32
    %c0_i32_0 = arith.constant 0 : i32
    %c0_i32_1 = arith.constant 0 : i32
    return %c0_i32, %c0_i32_0 : i32, i32
  }
  func.func @transform_4(%arg0: i32) -> (i32, i32) {
    %c0_i32 = arith.constant 0 : i32
    %c0_i32_0 = arith.constant 0 : i32
    %c0_i32_1 = arith.constant 0 : i32
    return %c0_i32, %c0_i32_0 : i32, i32
  }
  func.func @transform_5(%arg0: i32) -> (i32, i32) {
    %c0_i32 = arith.constant 0 : i32
    %c0_i32_0 = arith.constant 0 : i32
    %c0_i32_1 = arith.constant 0 : i32
    return %c0_i32, %c0_i32_0 : i32, i32
  }
  func.func @transform_6(%arg0: i32) -> (i32, i32) {
    %c0_i32 = arith.constant 0 : i32
    %c0_i32_0 = arith.constant 0 : i32
    %c0_i32_1 = arith.constant 0 : i32
    return %c0_i32, %c0_i32_0 : i32, i32
  }
  func.func @transform_7(%arg0: i32) -> (i32, i32) {
    %c0_i32 = arith.constant 0 : i32
    %c0_i32_0 = arith.constant 0 : i32
    %c0_i32_1 = arith.constant 0 : i32
    return %c0_i32, %c0_i32_0 : i32, i32
  }
  func.func @transform_8(%arg0: i32) -> (i32, i32) {
    %c0_i32 = arith.constant 0 : i32
    %c0_i32_0 = arith.constant 0 : i32
    %c0_i32_1 = arith.constant 0 : i32
    return %c0_i32, %c0_i32_0 : i32, i32
  }
}

</mosaic_0001>

<llo_original>
// kernel: tpu_custom_call.1
$region0: #{tpu_custom_call.1}
  #allocation0 [shape = 'u32[]', space=smem, size = 0x4, offset = 0x4, fixed_abs, tag = 'smem constant byte address 0x4 - core index']
  #allocation1 [shape = 'u32[144,128]{1,0:T(1,128)}', space=vmem, size = 0x12000, scoped, tag = 'internal scratch']
  %s0 = inlined_call_operand.hbm [shape: f32[16,32], index: 0, kind: input, shape index: {}]
  %s1 = inlined_call_operand.vmem [shape: f32[32,96], index: 1, kind: input, shape index: {}]
  %s2 = inlined_call_operand.vmem [shape: f32[1,96], index: 2, kind: input, shape index: {}]
  %s3 = inlined_call_operand.vmem [shape: f32[32,32], index: 3, kind: input, shape index: {}]
  %s4 = inlined_call_operand.vmem [shape: f32[32,64], index: 4, kind: input, shape index: {}]
  %s5 = inlined_call_operand.vmem [shape: f32[1,64], index: 5, kind: input, shape index: {}]
  %s6 = inlined_call_operand.vmem [shape: f32[64,32], index: 6, kind: input, shape index: {}]
  %s7 = inlined_call_operand.vmem [shape: f32[6,32], index: 7, kind: input, shape index: {}]
  %s8 = inlined_call_operand.hbm [shape: f32[16,32], index: 8, kind: output, shape index: {}]
  %s9 = sld [smem:[#allocation0]]
  $region46: #{tpu_custom_call.1} parent=0
    _
  %s11 = ssub.s32 1, %s9
  %s12 = scalar_select 0, %s11, %s9
  $region1: #{tpu_custom_call.1} parent=0
    #allocation2 [shape = 'u8[8192]{0}', space=vmem, size = 0x2000, scoped, tag = 'input window, operand 0, single buffered']
    #allocation3 [shape = 's32[1]{0}', space=sflag, size = 0x4, scoped, tag = 'scoped memory for tpu_custom_call.1']
    #allocation4 [shape = 's32[1]{0}', space=sflag, size = 0x4, scoped, tag = 'scoped memory for tpu_custom_call.1']
    #allocation5 [shape = 'u8[8192]{0}', space=vmem, size = 0x2000, scoped, tag = 'output window, operand 0, single buffered']
    %13 = vsyncpa [#allocation3], 0
    %14 = vsyncpa [#allocation4], 0
    // Predicated region
    $region2: #{tpu_custom_call.1} parent=1 // pred_check
      _
    $region3: #{tpu_custom_call.1} parent=1 // pred_check_branch
      %16 = sbr.rel (0) target = $region5
    $region4: #{tpu_custom_call.1} parent=1 // pred_region
      %s18 = ssub.s32 256, 256
      %19 = vsyncadd [#allocation3], %s18
      %s20 = sshll.u32 [#allocation2], 4
      %s21 = int_to_ptr.vmem [resolvable:$true] %s20
      %26 = dma.hbm_to_vmem [thread:$0]  %s0, 256, %s21, [#allocation3], 128, 128, 8
    $region5: #{tpu_custom_call.1} parent=1 // pred_fallthru
      _
    // Predicated region
    $region6: #{tpu_custom_call.1} parent=1 // pred_check
      _
    $region7: #{tpu_custom_call.1} parent=1 // pred_check_branch
      %28 = sbr.rel (0) target = $region9
    $region8: #{tpu_custom_call.1} parent=1 // pred_region
      _
    $region9: #{tpu_custom_call.1} parent=1 // pred_fallthru
      _
    // Predicated region
    $region10: #{tpu_custom_call.1} parent=1 // pred_check
      _
    $region11: #{tpu_custom_call.1} parent=1 // pred_check_branch
      %30 = sbr.rel (0) target = $region13
    $region12: #{tpu_custom_call.1} parent=1 // pred_region
      _
    $region13: #{tpu_custom_call.1} parent=1 // pred_fallthru
      _
    // Predicated region
    $region14: #{tpu_custom_call.1} parent=1 // pred_check
      _
    $region15: #{tpu_custom_call.1} parent=1 // pred_check_branch
      %32 = sbr.rel (0) target = $region17
    $region16: #{tpu_custom_call.1} parent=1 // pred_region
      _
    $region17: #{tpu_custom_call.1} parent=1 // pred_fallthru
      _
    // Predicated region
    $region18: #{tpu_custom_call.1} parent=1 // pred_check
      _
    $region19: #{tpu_custom_call.1} parent=1 // pred_check_branch
      %34 = sbr.rel (0) target = $region21
    $region20: #{tpu_custom_call.1} parent=1 // pred_region
      _
    $region21: #{tpu_custom_call.1} parent=1 // pred_fallthru
      _
    // Predicated region
    $region22: #{tpu_custom_call.1} parent=1 // pred_check
      _
    $region23: #{tpu_custom_call.1} parent=1 // pred_check_branch
      %36 = sbr.rel (0) target = $region25
    $region24: #{tpu_custom_call.1} parent=1 // pred_region
      _
    $region25: #{tpu_custom_call.1} parent=1 // pred_fallthru
      _
    // Predicated region
    $region26: #{tpu_custom_call.1} parent=1 // pred_check
      _
    $region27: #{tpu_custom_call.1} parent=1 // pred_check_branch
      %38 = sbr.rel (0) target = $region29
    $region28: #{tpu_custom_call.1} parent=1 // pred_region
      _
    $region29: #{tpu_custom_call.1} parent=1 // pred_fallthru
      _
    // Predicated region
    $region30: #{tpu_custom_call.1} parent=1 // pred_check
      _
    $region31: #{tpu_custom_call.1} parent=1 // pred_check_branch
      %40 = sbr.rel (0) target = $region33
    $region32: #{tpu_custom_call.1} parent=1 // pred_region
      _
    $region33: #{tpu_custom_call.1} parent=1 // pred_fallthru
      _
    // Predicated region
    $region34: #{tpu_custom_call.1} parent=1 // pred_check
      _
    $region35: #{tpu_custom_call.1} parent=1 // pred_check_branch
      %42 = sbr.rel (0) target = $region37
    $region36: #{tpu_custom_call.1} parent=1 // pred_region
      %43 = dma.done [#allocation3], 256
    $region37: #{tpu_custom_call.1} parent=1 // pred_fallthru
      _
    %v44 = vld [vmem:[#allocation2] sm:$0xff]
    %v45 = vld [vmem:[#allocation2 + $0x8] sm:$0xff]
    %v46 = vld [vmem:[%s1] sm:$0xff]
    %v47 = vld [vmem:[%s1 + $0x8] sm:$0xff]
    %v48 = vld [vmem:[%s1 + $0x10] sm:$0xff]
    %v49 = vld [vmem:[%s1 + $0x18] sm:$0xff]
    %v50 = vld [vmem:[%s2] sm:$0x1]
    %v52 = vlaneseq
    %v53 = vshrl.u32 %v52, 7
    %v54 = vsub.s32 0, %v53
    %v55 = vrot.slane %v50, %v54
    %vm57 = vcmask 261120
    %v59 = vsel %vm57, %v44, 0
    %v62 = vsel %vm57, %v45, 0
    %64 = vmatprep.subr.mxu0 0.0
    %65 = vmatpush1.msra.mxu0 %v46
    %66 = vmatprep.subr.mxu0 0.0
    %67 = vmatpush1.msra.mxu0 %v47
    %68 = vmatprep.subr.mxu0 0.0
    %69 = vmatpush1.msra.mxu0 %v48
    %70 = vmatprep.subr.mxu0 0.0
    %71 = vmatpush1.msra.mxu0 %v49
    %72 = vmatprep.subr.mxu0 0.0
    %73 = vmatpush1.msra.mxu0 0.0
    %74 = vmatprep.subr.mxu0 0.0
    %75 = vmatpush1.msra.mxu0 0.0
    %76 = vmatprep.subr.mxu0 0.0
    %77 = vmatpush1.msra.mxu0 0.0
    %78 = vmatprep.subr.mxu0 0.0
    %79 = vmatpush1.msra.mxu0 0.0
    %80 = vmatprep.subr.mxu0 0.0
    %81 = vmatpush1.msra.mxu0 0.0
    %82 = vmatprep.subr.mxu0 0.0
    %83 = vmatpush1.msra.mxu0 0.0
    %84 = vmatprep.subr.mxu0 0.0
    %85 = vmatpush1.msra.mxu0 0.0
    %86 = vmatprep.subr.mxu0 0.0
    %87 = vmatpush1.msra.mxu0 0.0
    %88 = vmatprep.subr.mxu0 0.0
    %89 = vmatpush1.msra.mxu0 0.0
    %90 = vmatprep.subr.mxu0 0.0
    %91 = vmatpush1.msra.mxu0 0.0
    %92 = vmatprep.subr.mxu0 0.0
    %93 = vmatpush1.msra.mxu0 0.0
    %94 = vmatprep.subr.mxu0 0.0
    %95 = vmatpush1.msra.mxu0 0.0
    %96 = vmatprep.subr.mxu0 0.0
    %97 = vmatpush1.msra.mxu0 0.0
    %98 = vmatprep.subr.mxu0 0.0
    %99 = vmatpush1.msra.mxu0 0.0
    %100 = vmatprep.subr.mxu0 0.0
    %101 = vmatpush1.msra.mxu0 0.0
    %102 = vmatprep.subr.mxu0 0.0
    %103 = vmatpush1.msra.mxu0 0.0
    %104 = vmatprep.subr.mxu0 0.0
    %105 = vmatpush1.msra.mxu0 0.0
    %106 = vmatprep.subr.mxu0 0.0
    %107 = vmatpush1.msra.mxu0 0.0
    %108 = vmatprep.subr.mxu0 0.0
    %109 = vmatpush1.msra.mxu0 0.0
    %110 = vmatprep.subr.mxu0 0.0
    %111 = vmatpush1.msra.mxu0 0.0
    %112 = vmatprep.subr.mxu0 0.0
    %113 = vmatpush1.msra.mxu0 0.0
    %114 = vmatprep.subr.mxu0 0.0
    %115 = vmatpush1.msra.mxu0 0.0
    %116 = vmatprep.subr.mxu0 0.0
    %117 = vmatpush1.msra.mxu0 0.0
    %118 = vmatprep.subr.mxu0 0.0
    %119 = vmatpush1.msra.mxu0 0.0
    %120 = vmatprep.subr.mxu0 0.0
    %121 = vmatpush1.msra.mxu0 0.0
    %122 = vmatprep.subr.mxu0 0.0
    %123 = vmatpush1.msra.mxu0 0.0
    %124 = vmatprep.subr.mxu0 0.0
    %125 = vmatpush1.msra.mxu0 0.0
    %126 = vmatprep.subr.mxu0 0.0
    %127 = vmatpush1.msra.mxu0 0.0
    %128 = vmatprep.mubr.f32.mxu0 0.0
    %129 = vmatmul.mubr.f32.gmra.mrb[0].mxu0 %v59
    %v130 = vpop.f32.mrb[0].mxu0
    %v131 = vadd.f32 %v55, %v130
    %v132 = vpop.f32.mrb[0].mxu0
    %133 = vmatprep.mubr.f32.mxu0 0.0
    %134 = vmatmul.mubr.f32.gmra.mrb[0].mxu0 %v62
    %v135 = vpop.f32.mrb[0].mxu0
    %v136 = vadd.f32 %v55, %v135
    %v137 = vpop.f32.mrb[0].mxu0
    %138 = vdwg.mxu0
    %141 = vrot.lane.b32.xlu0 %v131, 120
    %v142 = vpop.permute.xlu0 %141
    %143 = vrot.lane.b32.xlu0 %v136, 120
    %v144 = vpop.permute.xlu0 %143
    %145 = vrot.lane.b32.xlu0 %v131, 112
    %v146 = vpop.permute.xlu0 %145
    %147 = vrot.lane.b32.xlu0 %v136, 112
    %v148 = vpop.permute.xlu0 %147
    %149 = vrot.lane.b32.xlu0 %v131, 104
    %v150 = vpop.permute.xlu0 %149
    %151 = vrot.lane.b32.xlu0 %v136, 104
    %v152 = vpop.permute.xlu0 %151
    %v153 = vlaneseq
    %v154 = vshrl.u32 %v153, 7
    %v155 = vadd.s32 %v154, 8
    %vm156 = vcmp.lt.s32.totalorder %v154, 0
    %v157 = vsub.s32 0, %v154
    %v158 = vsel %vm156, %v157, %v154
    %v159 = vshrl.u32 %v158, 1
    %v160 = vand.u32 %v158, 1
    %v161 = vsub.s32 0, %v160
    %v162 = vsel %vm156, %v161, %v160
    %vm163 = vcmp.lt.s32.totalorder %v155, 0
    %v164 = vsub.s32 0, %v155
    %v165 = vsel %vm163, %v164, %v155
    %v166 = vshrl.u32 %v165, 1
    %v167 = vand.u32 %v165, 1
    %v168 = vsub.s32 0, %v167
    %v169 = vsel %vm163, %v168, %v167
    %vm170 = vcmp.ne.s32.totalorder %v162, 0
    %vm171 = vcmp.ne.s32.totalorder %v169, 0
    %vm172 = vcmp.lt.s32.totalorder %v162, 0
    %vm173 = vcmp.lt.s32.totalorder %v169, 0
    %vm174 = vmand %vm172, %vm170
    %vm175 = vmand %vm173, %vm171
    %v176 = vadd.s32 %v162, 2
    %v177 = vadd.s32 %v169, 2
    %v178 = vsel %vm174, %v176, %v162
    %v179 = vsel %vm175, %v177, %v169
    %v180 = vlaneseq
    %v181 = vand.u32 %v180, 127
    %vm182 = vcmp.lt.s32.totalorder %v181, 0
    %v183 = vsub.s32 0, %v181
    %v184 = vsel %vm182, %v183, %v181
    %v185 = vshrl.u32 %v184, 1
    %v186 = vand.u32 %v184, 1
    %v187 = vsub.s32 0, %v186
    %v188 = vsel %vm182, %v187, %v186
    %vm189 = vcmp.ne.s32.totalorder %v188, 0
    %vm190 = vcmp.lt.s32.totalorder %v188, 0
    %vm191 = vmand %vm190, %vm189
    %v192 = vadd.s32 %v188, 2
    %v193 = vsel %vm191, %v192, %v188
    %vm194 = vcmp.eq.s32.totalorder %v178, %v193
    %vm195 = vcmp.eq.s32.totalorder %v179, %v193
    %v196 = vsel %vm194, 0.0, -1e+30
    %v197 = vsel %vm195, 0.0, -1e+30
    %198 = vrot.lane.b32.xlu0 %v131, 96
    %v199 = vpop.permute.xlu0 %198
    %200 = vrot.lane.b32.xlu0 %v136, 96
    %v201 = vpop.permute.xlu0 %200
    %vm202 = vcmask 64512
    %v203 = vsel %vm202, %v131, 0
    %v205 = vsel %vm202, %v136, 0
    %v207 = vsel %vm202, %v199, 0
    %v209 = vsel %vm202, %v201, 0
    %211 = vmatprep.subr.mxu0 0.0
    %212 = vmatpush1.xpose.msra.mxu0 %v207
    %213 = vmatprep.subr.mxu0 0.0
    %214 = vmatpush1.xpose.msra.mxu0 %v209
    %215 = vmatprep.subr.mxu0 0.0
    %216 = vmatpush1.xpose.msra.mxu0 0.0
    %217 = vmatprep.subr.mxu0 0.0
    %218 = vmatpush1.xpose.msra.mxu0 0.0
    %219 = vmatprep.subr.mxu0 0.0
    %220 = vmatpush1.xpose.msra.mxu0 0.0
    %221 = vmatprep.subr.mxu0 0.0
    %222 = vmatpush1.xpose.msra.mxu0 0.0
    %223 = vmatprep.subr.mxu0 0.0
    %224 = vmatpush1.xpose.msra.mxu0 0.0
    %225 = vmatprep.subr.mxu0 0.0
    %226 = vmatpush1.xpose.msra.mxu0 0.0
    %227 = vmatprep.subr.mxu0 0.0
    %228 = vmatpush1.xpose.msra.mxu0 0.0
    %229 = vmatprep.subr.mxu0 0.0
    %230 = vmatpush1.xpose.msra.mxu0 0.0
    %231 = vmatprep.subr.mxu0 0.0
    %232 = vmatpush1.xpose.msra.mxu0 0.0
    %233 = vmatprep.subr.mxu0 0.0
    %234 = vmatpush1.xpose.msra.mxu0 0.0
    %235 = vmatprep.subr.mxu0 0.0
    %236 = vmatpush1.xpose.msra.mxu0 0.0
    %237 = vmatprep.subr.mxu0 0.0
    %238 = vmatpush1.xpose.msra.mxu0 0.0
    %239 = vmatprep.subr.mxu0 0.0
    %240 = vmatpush1.xpose.msra.mxu0 0.0
    %241 = vmatprep.subr.mxu0 0.0
    %242 = vmatpush1.xpose.msra.mxu0 0.0
    %243 = vmatprep.subr.mxu0 0.0
    %244 = vmatpush1.xpose.msra.mxu0 0.0
    %245 = vmatprep.subr.mxu0 0.0
    %246 = vmatpush1.xpose.msra.mxu0 0.0
    %247 = vmatprep.subr.mxu0 0.0
    %248 = vmatpush1.xpose.msra.mxu0 0.0
    %249 = vmatprep.subr.mxu0 0.0
    %250 = vmatpush1.xpose.msra.mxu0 0.0
    %251 = vmatprep.subr.mxu0 0.0
    %252 = vmatpush1.xpose.msra.mxu0 0.0
    %253 = vmatprep.subr.mxu0 0.0
    %254 = vmatpush1.xpose.msra.mxu0 0.0
    %255 = vmatprep.subr.mxu0 0.0
    %256 = vmatpush1.xpose.msra.mxu0 0.0
    %257 = vmatprep.subr.mxu0 0.0
    %258 = vmatpush1.xpose.msra.mxu0 0.0
    %259 = vmatprep.subr.mxu0 0.0
    %260 = vmatpush1.xpose.msra.mxu0 0.0
    %261 = vmatprep.subr.mxu0 0.0
    %262 = vmatpush1.xpose.msra.mxu0 0.0
    %263 = vmatprep.subr.mxu0 0.0
    %264 = vmatpush1.xpose.msra.mxu0 0.0
    %265 = vmatprep.subr.mxu0 0.0
    %266 = vmatpush1.xpose.msra.mxu0 0.0
    %267 = vmatprep.subr.mxu0 0.0
    %268 = vmatpush1.xpose.msra.mxu0 0.0
    %269 = vmatprep.subr.mxu0 0.0
    %270 = vmatpush1.xpose.msra.mxu0 0.0
    %271 = vmatprep.subr.mxu0 0.0
    %272 = vmatpush1.xpose.msra.mxu0 0.0
    %273 = vmatprep.subr.mxu0 0.0
    %274 = vmatpush1.xpose.msra.mxu0 0.0
    %275 = vmatprep.mubr.f32.mxu0 0.0
    %276 = vmatmul.mubr.f32.gmra.mrb[0].mxu0 %v203
    %v277 = vpop.f32.mrb[0].mxu0
    %v278 = vadd.f32 %v196, %v277
    %v279 = vpop.f32.mrb[0].mxu0
    %280 = vmatprep.mubr.f32.mxu0 0.0
    %281 = vmatmul.mubr.f32.gmra.mrb[0].mxu0 %v205
    %v282 = vpop.f32.mrb[0].mxu0
    %v283 = vadd.f32 %v197, %v282
    %v284 = vpop.f32.mrb[0].mxu0
    %285 = vdwg.mxu0
    %286 = vrot.lane.b32.xlu0 %v142, 96
    %v287 = vpop.permute.xlu0 %286
    %288 = vrot.lane.b32.xlu0 %v144, 96
    %v289 = vpop.permute.xlu0 %288
    %v290 = vsel %vm202, %v142, 0
    %v292 = vsel %vm202, %v144, 0
    %v294 = vsel %vm202, %v287, 0
    %v296 = vsel %vm202, %v289, 0
    %298 = vmatprep.subr.mxu0 0.0
    %299 = vmatpush1.xpose.msra.mxu0 %v294
    %300 = vmatprep.subr.mxu0 0.0
    %301 = vmatpush1.xpose.msra.mxu0 %v296
    %302 = vmatprep.subr.mxu0 0.0
    %303 = vmatpush1.xpose.msra.mxu0 0.0
    %304 = vmatprep.subr.mxu0 0.0
    %305 = vmatpush1.xpose.msra.mxu0 0.0
    %306 = vmatprep.subr.mxu0 0.0
    %307 = vmatpush1.xpose.msra.mxu0 0.0
    %308 = vmatprep.subr.mxu0 0.0
    %309 = vmatpush1.xpose.msra.mxu0 0.0
    %310 = vmatprep.subr.mxu0 0.0
    %311 = vmatpush1.xpose.msra.mxu0 0.0
    %312 = vmatprep.subr.mxu0 0.0
    %313 = vmatpush1.xpose.msra.mxu0 0.0
    %314 = vmatprep.subr.mxu0 0.0
    %315 = vmatpush1.xpose.msra.mxu0 0.0
    %316 = vmatprep.subr.mxu0 0.0
    %317 = vmatpush1.xpose.msra.mxu0 0.0
    %318 = vmatprep.subr.mxu0 0.0
    %319 = vmatpush1.xpose.msra.mxu0 0.0
    %320 = vmatprep.subr.mxu0 0.0
    %321 = vmatpush1.xpose.msra.mxu0 0.0
    %322 = vmatprep.subr.mxu0 0.0
    %323 = vmatpush1.xpose.msra.mxu0 0.0
    %324 = vmatprep.subr.mxu0 0.0
    %325 = vmatpush1.xpose.msra.mxu0 0.0
    %326 = vmatprep.subr.mxu0 0.0
    %327 = vmatpush1.xpose.msra.mxu0 0.0
    %328 = vmatprep.subr.mxu0 0.0
    %329 = vmatpush1.xpose.msra.mxu0 0.0
    %330 = vmatprep.subr.mxu0 0.0
    %331 = vmatpush1.xpose.msra.mxu0 0.0
    %332 = vmatprep.subr.mxu0 0.0
    %333 = vmatpush1.xpose.msra.mxu0 0.0
    %334 = vmatprep.subr.mxu0 0.0
    %335 = vmatpush1.xpose.msra.mxu0 0.0
    %336 = vmatprep.subr.mxu0 0.0
    %337 = vmatpush1.xpose.msra.mxu0 0.0
    %338 = vmatprep.subr.mxu0 0.0
    %339 = vmatpush1.xpose.msra.mxu0 0.0
    %340 = vmatprep.subr.mxu0 0.0
    %341 = vmatpush1.xpose.msra.mxu0 0.0
    %342 = vmatprep.subr.mxu0 0.0
    %343 = vmatpush1.xpose.msra.mxu0 0.0
    %344 = vmatprep.subr.mxu0 0.0
    %345 = vmatpush1.xpose.msra.mxu0 0.0
    %346 = vmatprep.subr.mxu0 0.0
    %347 = vmatpush1.xpose.msra.mxu0 0.0
    %348 = vmatprep.subr.mxu0 0.0
    %349 = vmatpush1.xpose.msra.mxu0 0.0
    %350 = vmatprep.subr.mxu0 0.0
    %351 = vmatpush1.xpose.msra.mxu0 0.0
    %352 = vmatprep.subr.mxu0 0.0
    %353 = vmatpush1.xpose.msra.mxu0 0.0
    %354 = vmatprep.subr.mxu0 0.0
    %355 = vmatpush1.xpose.msra.mxu0 0.0
    %356 = vmatprep.subr.mxu0 0.0
    %357 = vmatpush1.xpose.msra.mxu0 0.0
    %358 = vmatprep.subr.mxu0 0.0
    %359 = vmatpush1.xpose.msra.mxu0 0.0
    %360 = vmatprep.subr.mxu0 0.0
    %361 = vmatpush1.xpose.msra.mxu0 0.0
    %362 = vmatprep.mubr.f32.mxu0 0.0
    %363 = vmatmul.mubr.f32.gmra.mrb[0].mxu0 %v290
    %v364 = vpop.f32.mrb[0].mxu0
    %v365 = vadd.f32 %v196, %v364
    %v366 = vpop.f32.mrb[0].mxu0
    %367 = vmatprep.mubr.f32.mxu0 0.0
    %368 = vmatmul.mubr.f32.gmra.mrb[0].mxu0 %v292
    %v369 = vpop.f32.mrb[0].mxu0
    %v370 = vadd.f32 %v197, %v369
    %v371 = vpop.f32.mrb[0].mxu0
    %372 = vdwg.mxu0
    %373 = vrot.lane.b32.xlu0 %v146, 96
    %v374 = vpop.permute.xlu0 %373
    %375 = vrot.lane.b32.xlu0 %v148, 96
    %v376 = vpop.permute.xlu0 %375
    %v377 = vsel %vm202, %v146, 0
    %v379 = vsel %vm202, %v148, 0
    %v381 = vsel %vm202, %v374, 0
    %v383 = vsel %vm202, %v376, 0
    %385 = vmatprep.subr.mxu0 0.0
    %386 = vmatpush1.xpose.msra.mxu0 %v381
    %387 = vmatprep.subr.mxu0 0.0
    %388 = vmatpush1.xpose.msra.mxu0 %v383
    %389 = vmatprep.subr.mxu0 0.0
    %390 = vmatpush1.xpose.msra.mxu0 0.0
    %391 = vmatprep.subr.mxu0 0.0
    %392 = vmatpush1.xpose.msra.mxu0 0.0
    %393 = vmatprep.subr.mxu0 0.0
    %394 = vmatpush1.xpose.msra.mxu0 0.0
    %395 = vmatprep.subr.mxu0 0.0
    %396 = vmatpush1.xpose.msra.mxu0 0.0
    %397 = vmatprep.subr.mxu0 0.0
    %398 = vmatpush1.xpose.msra.mxu0 0.0
    %399 = vmatprep.subr.mxu0 0.0
    %400 = vmatpush1.xpose.msra.mxu0 0.0
    %401 = vmatprep.subr.mxu0 0.0
    %402 = vmatpush1.xpose.msra.mxu0 0.0
    %403 = vmatprep.subr.mxu0 0.0
    %404 = vmatpush1.xpose.msra.mxu0 0.0
    %405 = vmatprep.subr.mxu0 0.0
    %406 = vmatpush1.xpose.msra.mxu0 0.0
    %407 = vmatprep.subr.mxu0 0.0
    %408 = vmatpush1.xpose.msra.mxu0 0.0
    %409 = vmatprep.subr.mxu0 0.0
    %410 = vmatpush1.xpose.msra.mxu0 0.0
    %411 = vmatprep.subr.mxu0 0.0
    %412 = vmatpush1.xpose.msra.mxu0 0.0
    %413 = vmatprep.subr.mxu0 0.0
    %414 = vmatpush1.xpose.msra.mxu0 0.0
    %415 = vmatprep.subr.mxu0 0.0
    %416 = vmatpush1.xpose.msra.mxu0 0.0
    %417 = vmatprep.subr.mxu0 0.0
    %418 = vmatpush1.xpose.msra.mxu0 0.0
    %419 = vmatprep.subr.mxu0 0.0
    %420 = vmatpush1.xpose.msra.mxu0 0.0
    %421 = vmatprep.subr.mxu0 0.0
    %422 = vmatpush1.xpose.msra.mxu0 0.0
    %423 = vmatprep.subr.mxu0 0.0
    %424 = vmatpush1.xpose.msra.mxu0 0.0
    %425 = vmatprep.subr.mxu0 0.0
    %426 = vmatpush1.xpose.msra.mxu0 0.0
    %427 = vmatprep.subr.mxu0 0.0
    %428 = vmatpush1.xpose.msra.mxu0 0.0
    %429 = vmatprep.subr.mxu0 0.0
    %430 = vmatpush1.xpose.msra.mxu0 0.0
    %431 = vmatprep.subr.mxu0 0.0
    %432 = vmatpush1.xpose.msra.mxu0 0.0
    %433 = vmatprep.subr.mxu0 0.0
    %434 = vmatpush1.xpose.msra.mxu0 0.0
    %435 = vmatprep.subr.mxu0 0.0
    %436 = vmatpush1.xpose.msra.mxu0 0.0
    %437 = vmatprep.subr.mxu0 0.0
    %438 = vmatpush1.xpose.msra.mxu0 0.0
    %439 = vmatprep.subr.mxu0 0.0
    %440 = vmatpush1.xpose.msra.mxu0 0.0
    %441 = vmatprep.subr.mxu0 0.0
    %442 = vmatpush1.xpose.msra.mxu0 0.0
    %443 = vmatprep.subr.mxu0 0.0
    %444 = vmatpush1.xpose.msra.mxu0 0.0
    %445 = vmatprep.subr.mxu0 0.0
    %446 = vmatpush1.xpose.msra.mxu0 0.0
    %447 = vmatprep.subr.mxu0 0.0
    %448 = vmatpush1.xpose.msra.mxu0 0.0
    %449 = vmatprep.mubr.f32.mxu0 0.0
    %450 = vmatmul.mubr.f32.gmra.mrb[0].mxu0 %v377
    %v451 = vpop.f32.mrb[0].mxu0
    %v452 = vadd.f32 %v196, %v451
    %v453 = vpop.f32.mrb[0].mxu0
    %454 = vmatprep.mubr.f32.mxu0 0.0
    %455 = vmatmul.mubr.f32.gmra.mrb[0].mxu0 %v379
    %v456 = vpop.f32.mrb[0].mxu0
    %v457 = vadd.f32 %v197, %v456
    %v458 = vpop.f32.mrb[0].mxu0
    %459 = vdwg.mxu0
    %460 = vrot.lane.b32.xlu0 %v150, 96
    %v461 = vpop.permute.xlu0 %460
    %462 = vrot.lane.b32.xlu0 %v152, 96
    %v463 = vpop.permute.xlu0 %462
    %v464 = vsel %vm202, %v150, 0
    %v466 = vsel %vm202, %v152, 0
    %v468 = vsel %vm202, %v461, 0
    %v470 = vsel %vm202, %v463, 0
    %472 = vmatprep.subr.mxu0 0.0
    %473 = vmatpush1.xpose.msra.mxu0 %v468
    %474 = vmatprep.subr.mxu0 0.0
    %475 = vmatpush1.xpose.msra.mxu0 %v470
    %476 = vmatprep.subr.mxu0 0.0
    %477 = vmatpush1.xpose.msra.mxu0 0.0
    %478 = vmatprep.subr.mxu0 0.0
    %479 = vmatpush1.xpose.msra.mxu0 0.0
    %480 = vmatprep.subr.mxu0 0.0
    %481 = vmatpush1.xpose.msra.mxu0 0.0
    %482 = vmatprep.subr.mxu0 0.0
    %483 = vmatpush1.xpose.msra.mxu0 0.0
    %484 = vmatprep.subr.mxu0 0.0
    %485 = vmatpush1.xpose.msra.mxu0 0.0
    %486 = vmatprep.subr.mxu0 0.0
    %487 = vmatpush1.xpose.msra.mxu0 0.0
    %488 = vmatprep.subr.mxu0 0.0
    %489 = vmatpush1.xpose.msra.mxu0 0.0
    %490 = vmatprep.subr.mxu0 0.0
    %491 = vmatpush1.xpose.msra.mxu0 0.0
    %492 = vmatprep.subr.mxu0 0.0
    %493 = vmatpush1.xpose.msra.mxu0 0.0
    %494 = vmatprep.subr.mxu0 0.0
    %495 = vmatpush1.xpose.msra.mxu0 0.0
    %496 = vmatprep.subr.mxu0 0.0
    %497 = vmatpush1.xpose.msra.mxu0 0.0
    %498 = vmatprep.subr.mxu0 0.0
    %499 = vmatpush1.xpose.msra.mxu0 0.0
    %500 = vmatprep.subr.mxu0 0.0
    %501 = vmatpush1.xpose.msra.mxu0 0.0
    %502 = vmatprep.subr.mxu0 0.0
    %503 = vmatpush1.xpose.msra.mxu0 0.0
    %504 = vmatprep.subr.mxu0 0.0
    %505 = vmatpush1.xpose.msra.mxu0 0.0
    %506 = vmatprep.subr.mxu0 0.0
    %507 = vmatpush1.xpose.msra.mxu0 0.0
    %508 = vmatprep.subr.mxu0 0.0
    %509 = vmatpush1.xpose.msra.mxu0 0.0
    %510 = vmatprep.subr.mxu0 0.0
    %511 = vmatpush1.xpose.msra.mxu0 0.0
    %512 = vmatprep.subr.mxu0 0.0
    %513 = vmatpush1.xpose.msra.mxu0 0.0
    %514 = vmatprep.subr.mxu0 0.0
    %515 = vmatpush1.xpose.msra.mxu0 0.0
    %516 = vmatprep.subr.mxu0 0.0
    %517 = vmatpush1.xpose.msra.mxu0 0.0
    %518 = vmatprep.subr.mxu0 0.0
    %519 = vmatpush1.xpose.msra.mxu0 0.0
    %520 = vmatprep.subr.mxu0 0.0
    %521 = vmatpush1.xpose.msra.mxu0 0.0
    %522 = vmatprep.subr.mxu0 0.0
    %523 = vmatpush1.xpose.msra.mxu0 0.0
    %524 = vmatprep.subr.mxu0 0.0
    %525 = vmatpush1.xpose.msra.mxu0 0.0
    %526 = vmatprep.subr.mxu0 0.0
    %527 = vmatpush1.xpose.msra.mxu0 0.0
    %528 = vmatprep.subr.mxu0 0.0
    %529 = vmatpush1.xpose.msra.mxu0 0.0
    %530 = vmatprep.subr.mxu0 0.0
    %531 = vmatpush1.xpose.msra.mxu0 0.0
    %532 = vmatprep.subr.mxu0 0.0
    %533 = vmatpush1.xpose.msra.mxu0 0.0
    %534 = vmatprep.subr.mxu0 0.0
    %535 = vmatpush1.xpose.msra.mxu0 0.0
    %536 = vmatprep.mubr.f32.mxu0 0.0
    %537 = vmatmul.mubr.f32.gmra.mrb[0].mxu0 %v464
    %v538 = vpop.f32.mrb[0].mxu0
    %v539 = vadd.f32 %v196, %v538
    %v540 = vpop.f32.mrb[0].mxu0
    %541 = vmatprep.mubr.f32.mxu0 0.0
    %542 = vmatmul.mubr.f32.gmra.mrb[0].mxu0 %v466
    %v543 = vpop.f32.mrb[0].mxu0
    %v544 = vadd.f32 %v197, %v543
    %v545 = vpop.f32.mrb[0].mxu0
    %546 = vdwg.mxu0
    %vm547 = vcmask 130048
    %v548 = vsel %vm547, %v278, -inf
    %549 = vmax.xlane.f32.xlu0 %v548
    %v550 = vpop.xlane.xlu0 %549
    %v551 = vsel %vm547, %v283, -inf
    %552 = vmax.xlane.f32.xlu0 %v551
    %v553 = vpop.xlane.xlu0 %552
    %v554 = vsel %vm547, %v365, -inf
    %555 = vmax.xlane.f32.xlu0 %v554
    %v556 = vpop.xlane.xlu0 %555
    %v557 = vsel %vm547, %v370, -inf
    %558 = vmax.xlane.f32.xlu0 %v557
    %v559 = vpop.xlane.xlu0 %558
    %v560 = vsel %vm547, %v452, -inf
    %561 = vmax.xlane.f32.xlu0 %v560
    %v562 = vpop.xlane.xlu0 %561
    %v563 = vsel %vm547, %v457, -inf
    %564 = vmax.xlane.f32.xlu0 %v563
    %v565 = vpop.xlane.xlu0 %564
    %v566 = vsel %vm547, %v539, -inf
    %567 = vmax.xlane.f32.xlu0 %v566
    %v568 = vpop.xlane.xlu0 %567
    %v569 = vsel %vm547, %v544, -inf
    %570 = vmax.xlane.f32.xlu0 %v569
    %v571 = vpop.xlane.xlu0 %570
    %v572 = vsub.f32 %v278, %v550
    %v573 = vsub.f32 %v283, %v553
    %v574 = vsub.f32 %v365, %v556
    %v575 = vsub.f32 %v370, %v559
    %v576 = vsub.f32 %v452, %v562
    %v577 = vsub.f32 %v457, %v565
    %v578 = vsub.f32 %v539, %v568
    %v579 = vsub.f32 %v544, %v571
    %v580 = vmul.f32 %v572, 1.442695
    %v581 = vpow.pop %v580
    %v582 = vmul.f32 %v573, 1.442695
    %v583 = vpow.pop %v582
    %v584 = vmul.f32 %v574, 1.442695
    %v585 = vpow.pop %v584
    %v586 = vmul.f32 %v575, 1.442695
    %v587 = vpow.pop %v586
    %v588 = vmul.f32 %v576, 1.442695
    %v589 = vpow.pop %v588
    %v590 = vmul.f32 %v577, 1.442695
    %v591 = vpow.pop %v590
    %v592 = vmul.f32 %v578, 1.442695
    %v593 = vpow.pop %v592
    %v594 = vmul.f32 %v579, 1.442695
    %v595 = vpow.pop %v594
    %v596 = vsel %vm547, %v581, 0.0
    %597 = vadd.xlane.f32.xlu0 %v596
    %v598 = vpop.xlane.xlu0 %597
    %v599 = vsel %vm547, %v583, 0.0
    %600 = vadd.xlane.f32.xlu0 %v599
    %v601 = vpop.xlane.xlu0 %600
    %v602 = vsel %vm547, %v585, 0.0
    %603 = vadd.xlane.f32.xlu0 %v602
    %v604 = vpop.xlane.xlu0 %603
    %v605 = vsel %vm547, %v587, 0.0
    %606 = vadd.xlane.f32.xlu0 %v605
    %v607 = vpop.xlane.xlu0 %606
    %v608 = vsel %vm547, %v589, 0.0
    %609 = vadd.xlane.f32.xlu0 %v608
    %v610 = vpop.xlane.xlu0 %609
    %v611 = vsel %vm547, %v591, 0.0
    %612 = vadd.xlane.f32.xlu0 %v611
    %v613 = vpop.xlane.xlu0 %612
    %v614 = vsel %vm547, %v593, 0.0
    %615 = vadd.xlane.f32.xlu0 %v614
    %v616 = vpop.xlane.xlu0 %615
    %v617 = vsel %vm547, %v595, 0.0
    %618 = vadd.xlane.f32.xlu0 %v617
    %v619 = vpop.xlane.xlu0 %618
    %v620 = vrcp.pop %v598
    %v621 = vrcp.pop %v601
    %v622 = vrcp.pop %v604
    %v623 = vrcp.pop %v607
    %v624 = vrcp.pop %v610
    %v625 = vrcp.pop %v613
    %v626 = vrcp.pop %v616
    %v627 = vrcp.pop %v619
    %v628 = vmul.f32 %v581, %v620
    %v629 = vmul.f32 %v583, %v621
    %v630 = vmul.f32 %v585, %v622
    %v631 = vmul.f32 %v587, %v623
    %v632 = vmul.f32 %v589, %v624
    %v633 = vmul.f32 %v591, %v625
    %v634 = vmul.f32 %v593, %v626
    %v635 = vmul.f32 %v595, %v627
    %636 = vrot.lane.b32.xlu0 %v131, 64
    %v637 = vpop.permute.xlu0 %636
    %638 = vrot.lane.b32.xlu0 %v136, 64
    %v639 = vpop.permute.xlu0 %638
    %v643 = vsel %vm547, %v628, 0
    %v646 = vsel %vm547, %v629, 0
    %648 = vmatprep.subr.mxu0 0.0
    %649 = vmatpush1.msra.mxu0 %v637
    %650 = vmatprep.subr.mxu0 0.0
    %651 = vmatpush1.msra.mxu0 %v639
    %652 = vmatprep.subr.mxu0 0.0
    %653 = vmatpush1.msra.mxu0 0.0
    %654 = vmatprep.subr.mxu0 0.0
    %655 = vmatpush1.msra.mxu0 0.0
    %656 = vmatprep.subr.mxu0 0.0
    %657 = vmatpush1.msra.mxu0 0.0
    %658 = vmatprep.subr.mxu0 0.0
    %659 = vmatpush1.msra.mxu0 0.0
    %660 = vmatprep.subr.mxu0 0.0
    %661 = vmatpush1.msra.mxu0 0.0
    %662 = vmatprep.subr.mxu0 0.0
    %663 = vmatpush1.msra.mxu0 0.0
    %664 = vmatprep.subr.mxu0 0.0
    %665 = vmatpush1.msra.mxu0 0.0
    %666 = vmatprep.subr.mxu0 0.0
    %667 = vmatpush1.msra.mxu0 0.0
    %668 = vmatprep.subr.mxu0 0.0
    %669 = vmatpush1.msra.mxu0 0.0
    %670 = vmatprep.subr.mxu0 0.0
    %671 = vmatpush1.msra.mxu0 0.0
    %672 = vmatprep.subr.mxu0 0.0
    %673 = vmatpush1.msra.mxu0 0.0
    %674 = vmatprep.subr.mxu0 0.0
    %675 = vmatpush1.msra.mxu0 0.0
    %676 = vmatprep.subr.mxu0 0.0
    %677 = vmatpush1.msra.mxu0 0.0
    %678 = vmatprep.subr.mxu0 0.0
    %679 = vmatpush1.msra.mxu0 0.0
    %680 = vmatprep.subr.mxu0 0.0
    %681 = vmatpush1.msra.mxu0 0.0
    %682 = vmatprep.subr.mxu0 0.0
    %683 = vmatpush1.msra.mxu0 0.0
    %684 = vmatprep.subr.mxu0 0.0
    %685 = vmatpush1.msra.mxu0 0.0
    %686 = vmatprep.subr.mxu0 0.0
    %687 = vmatpush1.msra.mxu0 0.0
    %688 = vmatprep.subr.mxu0 0.0
    %689 = vmatpush1.msra.mxu0 0.0
    %690 = vmatprep.subr.mxu0 0.0
    %691 = vmatpush1.msra.mxu0 0.0
    %692 = vmatprep.subr.mxu0 0.0
    %693 = vmatpush1.msra.mxu0 0.0
    %694 = vmatprep.subr.mxu0 0.0
    %695 = vmatpush1.msra.mxu0 0.0
    %696 = vmatprep.subr.mxu0 0.0
    %697 = vmatpush1.msra.mxu0 0.0
    %698 = vmatprep.subr.mxu0 0.0
    %699 = vmatpush1.msra.mxu0 0.0
    %700 = vmatprep.subr.mxu0 0.0
    %701 = vmatpush1.msra.mxu0 0.0
    %702 = vmatprep.subr.mxu0 0.0
    %703 = vmatpush1.msra.mxu0 0.0
    %704 = vmatprep.subr.mxu0 0.0
    %705 = vmatpush1.msra.mxu0 0.0
    %706 = vmatprep.subr.mxu0 0.0
    %707 = vmatpush1.msra.mxu0 0.0
    %708 = vmatprep.subr.mxu0 0.0
    %709 = vmatpush1.msra.mxu0 0.0
    %710 = vmatprep.subr.mxu0 0.0
    %711 = vmatpush1.msra.mxu0 0.0
    %712 = vmatprep.mubr.f32.mxu0 0.0
    %713 = vmatmul.mubr.f32.gmra.mrb[0].mxu0 %v643
    %v714 = vpop.f32.mrb[0].mxu0
    %v715 = vadd.f32 0.0, %v714
    %v716 = vpop.f32.mrb[0].mxu0
    %717 = vmatprep.mubr.f32.mxu0 0.0
    %718 = vmatmul.mubr.f32.gmra.mrb[0].mxu0 %v646
    %v719 = vpop.f32.mrb[0].mxu0
    %v720 = vadd.f32 0.0, %v719
    %v721 = vpop.f32.mrb[0].mxu0
    %722 = vdwg.mxu0
    %723 = vrot.lane.b32.xlu0 %v142, 64
    %v724 = vpop.permute.xlu0 %723
    %725 = vrot.lane.b32.xlu0 %v144, 64
    %v726 = vpop.permute.xlu0 %725
    %v730 = vsel %vm547, %v630, 0
    %v733 = vsel %vm547, %v631, 0
    %735 = vmatprep.subr.mxu0 0.0
    %736 = vmatpush1.msra.mxu0 %v724
    %737 = vmatprep.subr.mxu0 0.0
    %738 = vmatpush1.msra.mxu0 %v726
    %739 = vmatprep.subr.mxu0 0.0
    %740 = vmatpush1.msra.mxu0 0.0
    %741 = vmatprep.subr.mxu0 0.0
    %742 = vmatpush1.msra.mxu0 0.0
    %743 = vmatprep.subr.mxu0 0.0
    %744 = vmatpush1.msra.mxu0 0.0
    %745 = vmatprep.subr.mxu0 0.0
    %746 = vmatpush1.msra.mxu0 0.0
    %747 = vmatprep.subr.mxu0 0.0
    %748 = vmatpush1.msra.mxu0 0.0
    %749 = vmatprep.subr.mxu0 0.0
    %750 = vmatpush1.msra.mxu0 0.0
    %751 = vmatprep.subr.mxu0 0.0
    %752 = vmatpush1.msra.mxu0 0.0
    %753 = vmatprep.subr.mxu0 0.0
    %754 = vmatpush1.msra.mxu0 0.0
    %755 = vmatprep.subr.mxu0 0.0
    %756 = vmatpush1.msra.mxu0 0.0
    %757 = vmatprep.subr.mxu0 0.0
    %758 = vmatpush1.msra.mxu0 0.0
    %759 = vmatprep.subr.mxu0 0.0
    %760 = vmatpush1.msra.mxu0 0.0
    %761 = vmatprep.subr.mxu0 0.0
    %762 = vmatpush1.msra.mxu0 0.0
    %763 = vmatprep.subr.mxu0 0.0
    %764 = vmatpush1.msra.mxu0 0.0
    %765 = vmatprep.subr.mxu0 0.0
    %766 = vmatpush1.msra.mxu0 0.0
    %767 = vmatprep.subr.mxu0 0.0
    %768 = vmatpush1.msra.mxu0 0.0
    %769 = vmatprep.subr.mxu0 0.0
    %770 = vmatpush1.msra.mxu0 0.0
    %771 = vmatprep.subr.mxu0 0.0
    %772 = vmatpush1.msra.mxu0 0.0
    %773 = vmatprep.subr.mxu0 0.0
    %774 = vmatpush1.msra.mxu0 0.0
    %775 = vmatprep.subr.mxu0 0.0
    %776 = vmatpush1.msra.mxu0 0.0
    %777 = vmatprep.subr.mxu0 0.0
    %778 = vmatpush1.msra.mxu0 0.0
    %779 = vmatprep.subr.mxu0 0.0
    %780 = vmatpush1.msra.mxu0 0.0
    %781 = vmatprep.subr.mxu0 0.0
    %782 = vmatpush1.msra.mxu0 0.0
    %783 = vmatprep.subr.mxu0 0.0
    %784 = vmatpush1.msra.mxu0 0.0
    %785 = vmatprep.subr.mxu0 0.0
    %786 = vmatpush1.msra.mxu0 0.0
    %787 = vmatprep.subr.mxu0 0.0
    %788 = vmatpush1.msra.mxu0 0.0
    %789 = vmatprep.subr.mxu0 0.0
    %790 = vmatpush1.msra.mxu0 0.0
    %791 = vmatprep.subr.mxu0 0.0
    %792 = vmatpush1.msra.mxu0 0.0
    %793 = vmatprep.subr.mxu0 0.0
    %794 = vmatpush1.msra.mxu0 0.0
    %795 = vmatprep.subr.mxu0 0.0
    %796 = vmatpush1.msra.mxu0 0.0
    %797 = vmatprep.subr.mxu0 0.0
    %798 = vmatpush1.msra.mxu0 0.0
    %799 = vmatprep.mubr.f32.mxu0 0.0
    %800 = vmatmul.mubr.f32.gmra.mrb[0].mxu0 %v730
    %v801 = vpop.f32.mrb[0].mxu0
    %v802 = vadd.f32 0.0, %v801
    %v803 = vpop.f32.mrb[0].mxu0
    %804 = vmatprep.mubr.f32.mxu0 0.0
    %805 = vmatmul.mubr.f32.gmra.mrb[0].mxu0 %v733
    %v806 = vpop.f32.mrb[0].mxu0
    %v807 = vadd.f32 0.0, %v806
    %v808 = vpop.f32.mrb[0].mxu0
    %809 = vdwg.mxu0
    %810 = vrot.lane.b32.xlu0 %v146, 64
    %v811 = vpop.permute.xlu0 %810
    %812 = vrot.lane.b32.xlu0 %v148, 64
    %v813 = vpop.permute.xlu0 %812
    %v817 = vsel %vm547, %v632, 0
    %v820 = vsel %vm547, %v633, 0
    %822 = vmatprep.subr.mxu0 0.0
    %823 = vmatpush1.msra.mxu0 %v811
    %824 = vmatprep.subr.mxu0 0.0
    %825 = vmatpush1.msra.mxu0 %v813
    %826 = vmatprep.subr.mxu0 0.0
    %827 = vmatpush1.msra.mxu0 0.0
    %828 = vmatprep.subr.mxu0 0.0
    %829 = vmatpush1.msra.mxu0 0.0
    %830 = vmatprep.subr.mxu0 0.0
    %831 = vmatpush1.msra.mxu0 0.0
    %832 = vmatprep.subr.mxu0 0.0
    %833 = vmatpush1.msra.mxu0 0.0
    %834 = vmatprep.subr.mxu0 0.0
    %835 = vmatpush1.msra.mxu0 0.0
    %836 = vmatprep.subr.mxu0 0.0
    %837 = vmatpush1.msra.mxu0 0.0
    %838 = vmatprep.subr.mxu0 0.0
    %839 = vmatpush1.msra.mxu0 0.0
    %840 = vmatprep.subr.mxu0 0.0
    %841 = vmatpush1.msra.mxu0 0.0
    %842 = vmatprep.subr.mxu0 0.0
    %843 = vmatpush1.msra.mxu0 0.0
    %844 = vmatprep.subr.mxu0 0.0
    %845 = vmatpush1.msra.mxu0 0.0
    %846 = vmatprep.subr.mxu0 0.0
    %847 = vmatpush1.msra.mxu0 0.0
    %848 = vmatprep.subr.mxu0 0.0
    %849 = vmatpush1.msra.mxu0 0.0
    %850 = vmatprep.subr.mxu0 0.0
    %851 = vmatpush1.msra.mxu0 0.0
    %852 = vmatprep.subr.mxu0 0.0
    %853 = vmatpush1.msra.mxu0 0.0
    %854 = vmatprep.subr.mxu0 0.0
    %855 = vmatpush1.msra.mxu0 0.0
    %856 = vmatprep.subr.mxu0 0.0
    %857 = vmatpush1.msra.mxu0 0.0
    %858 = vmatprep.subr.mxu0 0.0
    %859 = vmatpush1.msra.mxu0 0.0
    %860 = vmatprep.subr.mxu0 0.0
    %861 = vmatpush1.msra.mxu0 0.0
    %862 = vmatprep.subr.mxu0 0.0
    %863 = vmatpush1.msra.mxu0 0.0
    %864 = vmatprep.subr.mxu0 0.0
    %865 = vmatpush1.msra.mxu0 0.0
    %866 = vmatprep.subr.mxu0 0.0
    %867 = vmatpush1.msra.mxu0 0.0
    %868 = vmatprep.subr.mxu0 0.0
    %869 = vmatpush1.msra.mxu0 0.0
    %870 = vmatprep.subr.mxu0 0.0
    %871 = vmatpush1.msra.mxu0 0.0
    %872 = vmatprep.subr.mxu0 0.0
    %873 = vmatpush1.msra.mxu0 0.0
    %874 = vmatprep.subr.mxu0 0.0
    %875 = vmatpush1.msra.mxu0 0.0
    %876 = vmatprep.subr.mxu0 0.0
    %877 = vmatpush1.msra.mxu0 0.0
    %878 = vmatprep.subr.mxu0 0.0
    %879 = vmatpush1.msra.mxu0 0.0
    %880 = vmatprep.subr.mxu0 0.0
    %881 = vmatpush1.msra.mxu0 0.0
    %882 = vmatprep.subr.mxu0 0.0
    %883 = vmatpush1.msra.mxu0 0.0
    %884 = vmatprep.subr.mxu0 0.0
    %885 = vmatpush1.msra.mxu0 0.0
    %886 = vmatprep.mubr.f32.mxu0 0.0
    %887 = vmatmul.mubr.f32.gmra.mrb[0].mxu0 %v817
    %v888 = vpop.f32.mrb[0].mxu0
    %v889 = vadd.f32 0.0, %v888
    %v890 = vpop.f32.mrb[0].mxu0
    %891 = vmatprep.mubr.f32.mxu0 0.0
    %892 = vmatmul.mubr.f32.gmra.mrb[0].mxu0 %v820
    %v893 = vpop.f32.mrb[0].mxu0
    %v894 = vadd.f32 0.0, %v893
    %v895 = vpop.f32.mrb[0].mxu0
    %896 = vdwg.mxu0
    %897 = vrot.lane.b32.xlu0 %v150, 64
    %v898 = vpop.permute.xlu0 %897
    %899 = vrot.lane.b32.xlu0 %v152, 64
    %v900 = vpop.permute.xlu0 %899
    %v904 = vsel %vm547, %v634, 0
    %v907 = vsel %vm547, %v635, 0
    %909 = vmatprep.subr.mxu0 0.0
    %910 = vmatpush1.msra.mxu0 %v898
    %911 = vmatprep.subr.mxu0 0.0
    %912 = vmatpush1.msra.mxu0 %v900
    %913 = vmatprep.subr.mxu0 0.0
    %914 = vmatpush1.msra.mxu0 0.0
    %915 = vmatprep.subr.mxu0 0.0
    %916 = vmatpush1.msra.mxu0 0.0
    %917 = vmatprep.subr.mxu0 0.0
    %918 = vmatpush1.msra.mxu0 0.0
    %919 = vmatprep.subr.mxu0 0.0
    %920 = vmatpush1.msra.mxu0 0.0
    %921 = vmatprep.subr.mxu0 0.0
    %922 = vmatpush1.msra.mxu0 0.0
    %923 = vmatprep.subr.mxu0 0.0
    %924 = vmatpush1.msra.mxu0 0.0
    %925 = vmatprep.subr.mxu0 0.0
    %926 = vmatpush1.msra.mxu0 0.0
    %927 = vmatprep.subr.mxu0 0.0
    %928 = vmatpush1.msra.mxu0 0.0
    %929 = vmatprep.subr.mxu0 0.0
    %930 = vmatpush1.msra.mxu0 0.0
    %931 = vmatprep.subr.mxu0 0.0
    %932 = vmatpush1.msra.mxu0 0.0
    %933 = vmatprep.subr.mxu0 0.0
    %934 = vmatpush1.msra.mxu0 0.0
    %935 = vmatprep.subr.mxu0 0.0
    %936 = vmatpush1.msra.mxu0 0.0
    %937 = vmatprep.subr.mxu0 0.0
    %938 = vmatpush1.msra.mxu0 0.0
    %939 = vmatprep.subr.mxu0 0.0
    %940 = vmatpush1.msra.mxu0 0.0
    %941 = vmatprep.subr.mxu0 0.0
    %942 = vmatpush1.msra.mxu0 0.0
    %943 = vmatprep.subr.mxu0 0.0
    %944 = vmatpush1.msra.mxu0 0.0
    %945 = vmatprep.subr.mxu0 0.0
    %946 = vmatpush1.msra.mxu0 0.0
    %947 = vmatprep.subr.mxu0 0.0
    %948 = vmatpush1.msra.mxu0 0.0
    %949 = vmatprep.subr.mxu0 0.0
    %950 = vmatpush1.msra.mxu0 0.0
    %951 = vmatprep.subr.mxu0 0.0
    %952 = vmatpush1.msra.mxu0 0.0
    %953 = vmatprep.subr.mxu0 0.0
    %954 = vmatpush1.msra.mxu0 0.0
    %955 = vmatprep.subr.mxu0 0.0
    %956 = vmatpush1.msra.mxu0 0.0
    %957 = vmatprep.subr.mxu0 0.0
    %958 = vmatpush1.msra.mxu0 0.0
    %959 = vmatprep.subr.mxu0 0.0
    %960 = vmatpush1.msra.mxu0 0.0
    %961 = vmatprep.subr.mxu0 0.0
    %962 = vmatpush1.msra.mxu0 0.0
    %963 = vmatprep.subr.mxu0 0.0
    %964 = vmatpush1.msra.mxu0 0.0
    %965 = vmatprep.subr.mxu0 0.0
    %966 = vmatpush1.msra.mxu0 0.0
    %967 = vmatprep.subr.mxu0 0.0
    %968 = vmatpush1.msra.mxu0 0.0
    %969 = vmatprep.subr.mxu0 0.0
    %970 = vmatpush1.msra.mxu0 0.0
    %971 = vmatprep.subr.mxu0 0.0
    %972 = vmatpush1.msra.mxu0 0.0
    %973 = vmatprep.mubr.f32.mxu0 0.0
    %974 = vmatmul.mubr.f32.gmra.mrb[0].mxu0 %v904
    %v975 = vpop.f32.mrb[0].mxu0
    %v976 = vadd.f32 0.0, %v975
    %v977 = vpop.f32.mrb[0].mxu0
    %978 = vmatprep.mubr.f32.mxu0 0.0
    %979 = vmatmul.mubr.f32.gmra.mrb[0].mxu0 %v907
    %v980 = vpop.f32.mrb[0].mxu0
    %v981 = vadd.f32 0.0, %v980
    %v982 = vpop.f32.mrb[0].mxu0
    %983 = vdwg.mxu0
    %v984 = vld [vmem:[%s3] sm:$0xff]
    %v985 = vld [vmem:[%s3 + $0x8] sm:$0xff]
    %v986 = vld [vmem:[%s3 + $0x10] sm:$0xff]
    %v987 = vld [vmem:[%s3 + $0x18] sm:$0xff]
    %v989 = vsel %vm202, %v802, 0
    %v992 = vsel %vm202, %v807, 0
    %994 = vmatprep.subr.mxu0 0.0
    %995 = vmatpush1.msra.mxu0 %v985
    %996 = vmatprep.subr.mxu0 0.0
    %997 = vmatpush1.msra.mxu0 0.0
    %998 = vmatprep.subr.mxu0 0.0
    %999 = vmatpush1.msra.mxu0 0.0
    %1000 = vmatprep.subr.mxu0 0.0
    %1001 = vmatpush1.msra.mxu0 0.0
    %1002 = vmatprep.subr.mxu0 0.0
    %1003 = vmatpush1.msra.mxu0 0.0
    %1004 = vmatprep.subr.mxu0 0.0
    %1005 = vmatpush1.msra.mxu0 0.0
    %1006 = vmatprep.subr.mxu0 0.0
    %1007 = vmatpush1.msra.mxu0 0.0
    %1008 = vmatprep.subr.mxu0 0.0
    %1009 = vmatpush1.msra.mxu0 0.0
    %1010 = vmatprep.subr.mxu0 0.0
    %1011 = vmatpush1.msra.mxu0 0.0
    %1012 = vmatprep.subr.mxu0 0.0
    %1013 = vmatpush1.msra.mxu0 0.0
    %1014 = vmatprep.subr.mxu0 0.0
    %1015 = vmatpush1.msra.mxu0 0.0
    %1016 = vmatprep.subr.mxu0 0.0
    %1017 = vmatpush1.msra.mxu0 0.0
    %1018 = vmatprep.subr.mxu0 0.0
    %1019 = vmatpush1.msra.mxu0 0.0
    %1020 = vmatprep.subr.mxu0 0.0
    %1021 = vmatpush1.msra.mxu0 0.0
    %1022 = vmatprep.subr.mxu0 0.0
    %1023 = vmatpush1.msra.mxu0 0.0
    %1024 = vmatprep.subr.mxu0 0.0
    %1025 = vmatpush1.msra.mxu0 0.0
    %1026 = vmatprep.subr.mxu0 0.0
    %1027 = vmatpush1.msra.mxu0 0.0
    %1028 = vmatprep.subr.mxu0 0.0
    %1029 = vmatpush1.msra.mxu0 0.0
    %1030 = vmatprep.subr.mxu0 0.0
    %1031 = vmatpush1.msra.mxu0 0.0
    %1032 = vmatprep.subr.mxu0 0.0
    %1033 = vmatpush1.msra.mxu0 0.0
    %1034 = vmatprep.subr.mxu0 0.0
    %1035 = vmatpush1.msra.mxu0 0.0
    %1036 = vmatprep.subr.mxu0 0.0
    %1037 = vmatpush1.msra.mxu0 0.0
    %1038 = vmatprep.subr.mxu0 0.0
    %1039 = vmatpush1.msra.mxu0 0.0
    %1040 = vmatprep.subr.mxu0 0.0
    %1041 = vmatpush1.msra.mxu0 0.0
    %1042 = vmatprep.subr.mxu0 0.0
    %1043 = vmatpush1.msra.mxu0 0.0
    %1044 = vmatprep.subr.mxu0 0.0
    %1045 = vmatpush1.msra.mxu0 0.0
    %1046 = vmatprep.subr.mxu0 0.0
    %1047 = vmatpush1.msra.mxu0 0.0
    %1048 = vmatprep.subr.mxu0 0.0
    %1049 = vmatpush1.msra.mxu0 0.0
    %1050 = vmatprep.subr.mxu0 0.0
    %1051 = vmatpush1.msra.mxu0 0.0
    %1052 = vmatprep.subr.mxu0 0.0
    %1053 = vmatpush1.msra.mxu0 0.0
    %1054 = vmatprep.subr.mxu0 0.0
    %1055 = vmatpush1.msra.mxu0 0.0
    %1056 = vmatprep.subr.mxu0 0.0
    %1057 = vmatpush1.msra.mxu0 0.0
    %1058 = vmatprep.mubr.f32.mxu0 0.0
    %1059 = vmatmul.mubr.f32.gmra.mrb[0].mxu0 %v989
    %v1060 = vpop.f32.mrb[0].mxu0
    %v1061 = vadd.f32 0.0, %v1060
    %v1062 = vpop.f32.mrb[0].mxu0
    %1063 = vmatprep.mubr.f32.mxu0 0.0
    %1064 = vmatmul.mubr.f32.gmra.mrb[0].mxu0 %v992
    %v1065 = vpop.f32.mrb[0].mxu0
    %v1066 = vadd.f32 0.0, %v1065
    %v1067 = vpop.f32.mrb[0].mxu0
    %1068 = vdwg.mxu0
    %v1070 = vsel %vm202, %v715, 0
    %v1073 = vsel %vm202, %v720, 0
    %1075 = vmatprep.subr.mxu0 0.0
    %1076 = vmatpush1.msra.mxu0 %v984
    %1077 = vmatprep.subr.mxu0 0.0
    %1078 = vmatpush1.msra.mxu0 0.0
    %1079 = vmatprep.subr.mxu0 0.0
    %1080 = vmatpush1.msra.mxu0 0.0
    %1081 = vmatprep.subr.mxu0 0.0
    %1082 = vmatpush1.msra.mxu0 0.0
    %1083 = vmatprep.subr.mxu0 0.0
    %1084 = vmatpush1.msra.mxu0 0.0
    %1085 = vmatprep.subr.mxu0 0.0
    %1086 = vmatpush1.msra.mxu0 0.0
    %1087 = vmatprep.subr.mxu0 0.0
    %1088 = vmatpush1.msra.mxu0 0.0
    %1089 = vmatprep.subr.mxu0 0.0
    %1090 = vmatpush1.msra.mxu0 0.0
    %1091 = vmatprep.subr.mxu0 0.0
    %1092 = vmatpush1.msra.mxu0 0.0
    %1093 = vmatprep.subr.mxu0 0.0
    %1094 = vmatpush1.msra.mxu0 0.0
    %1095 = vmatprep.subr.mxu0 0.0
    %1096 = vmatpush1.msra.mxu0 0.0
    %1097 = vmatprep.subr.mxu0 0.0
    %1098 = vmatpush1.msra.mxu0 0.0
    %1099 = vmatprep.subr.mxu0 0.0
    %1100 = vmatpush1.msra.mxu0 0.0
    %1101 = vmatprep.subr.mxu0 0.0
    %1102 = vmatpush1.msra.mxu0 0.0
    %1103 = vmatprep.subr.mxu0 0.0
    %1104 = vmatpush1.msra.mxu0 0.0
    %1105 = vmatprep.subr.mxu0 0.0
    %1106 = vmatpush1.msra.mxu0 0.0
    %1107 = vmatprep.subr.mxu0 0.0
    %1108 = vmatpush1.msra.mxu0 0.0
    %1109 = vmatprep.subr.mxu0 0.0
    %1110 = vmatpush1.msra.mxu0 0.0
    %1111 = vmatprep.subr.mxu0 0.0
    %1112 = vmatpush1.msra.mxu0 0.0
    %1113 = vmatprep.subr.mxu0 0.0
    %1114 = vmatpush1.msra.mxu0 0.0
    %1115 = vmatprep.subr.mxu0 0.0
    %1116 = vmatpush1.msra.mxu0 0.0
    %1117 = vmatprep.subr.mxu0 0.0
    %1118 = vmatpush1.msra.mxu0 0.0
    %1119 = vmatprep.subr.mxu0 0.0
    %1120 = vmatpush1.msra.mxu0 0.0
    %1121 = vmatprep.subr.mxu0 0.0
    %1122 = vmatpush1.msra.mxu0 0.0
    %1123 = vmatprep.subr.mxu0 0.0
    %1124 = vmatpush1.msra.mxu0 0.0
    %1125 = vmatprep.subr.mxu0 0.0
    %1126 = vmatpush1.msra.mxu0 0.0
    %1127 = vmatprep.subr.mxu0 0.0
    %1128 = vmatpush1.msra.mxu0 0.0
    %1129 = vmatprep.subr.mxu0 0.0
    %1130 = vmatpush1.msra.mxu0 0.0
    %1131 = vmatprep.subr.mxu0 0.0
    %1132 = vmatpush1.msra.mxu0 0.0
    %1133 = vmatprep.subr.mxu0 0.0
    %1134 = vmatpush1.msra.mxu0 0.0
    %1135 = vmatprep.subr.mxu0 0.0
    %1136 = vmatpush1.msra.mxu0 0.0
    %1137 = vmatprep.subr.mxu0 0.0
    %1138 = vmatpush1.msra.mxu0 0.0
    %1139 = vmatprep.mubr.f32.mxu0 0.0
    %1140 = vmatmul.mubr.f32.gmra.mrb[0].mxu0 %v1070
    %v1141 = vpop.f32.mrb[0].mxu0
    %v1142 = vadd.f32 %v1061, %v1141
    %v1143 = vpop.f32.mrb[0].mxu0
    %1144 = vmatprep.mubr.f32.mxu0 0.0
    %1145 = vmatmul.mubr.f32.gmra.mrb[0].mxu0 %v1073
    %v1146 = vpop.f32.mrb[0].mxu0
    %v1147 = vadd.f32 %v1066, %v1146
    %v1148 = vpop.f32.mrb[0].mxu0
    %1149 = vdwg.mxu0
    %v1151 = vsel %vm202, %v889, 0
    %v1154 = vsel %vm202, %v894, 0
    %1156 = vmatprep.subr.mxu0 0.0
    %1157 = vmatpush1.msra.mxu0 %v986
    %1158 = vmatprep.subr.mxu0 0.0
    %1159 = vmatpush1.msra.mxu0 0.0
    %1160 = vmatprep.subr.mxu0 0.0
    %1161 = vmatpush1.msra.mxu0 0.0
    %1162 = vmatprep.subr.mxu0 0.0
    %1163 = vmatpush1.msra.mxu0 0.0
    %1164 = vmatprep.subr.mxu0 0.0
    %1165 = vmatpush1.msra.mxu0 0.0
    %1166 = vmatprep.subr.mxu0 0.0
    %1167 = vmatpush1.msra.mxu0 0.0
    %1168 = vmatprep.subr.mxu0 0.0
    %1169 = vmatpush1.msra.mxu0 0.0
    %1170 = vmatprep.subr.mxu0 0.0
    %1171 = vmatpush1.msra.mxu0 0.0
    %1172 = vmatprep.subr.mxu0 0.0
    %1173 = vmatpush1.msra.mxu0 0.0
    %1174 = vmatprep.subr.mxu0 0.0
    %1175 = vmatpush1.msra.mxu0 0.0
    %1176 = vmatprep.subr.mxu0 0.0
    %1177 = vmatpush1.msra.mxu0 0.0
    %1178 = vmatprep.subr.mxu0 0.0
    %1179 = vmatpush1.msra.mxu0 0.0
    %1180 = vmatprep.subr.mxu0 0.0
    %1181 = vmatpush1.msra.mxu0 0.0
    %1182 = vmatprep.subr.mxu0 0.0
    %1183 = vmatpush1.msra.mxu0 0.0
    %1184 = vmatprep.subr.mxu0 0.0
    %1185 = vmatpush1.msra.mxu0 0.0
    %1186 = vmatprep.subr.mxu0 0.0
    %1187 = vmatpush1.msra.mxu0 0.0
    %1188 = vmatprep.subr.mxu0 0.0
    %1189 = vmatpush1.msra.mxu0 0.0
    %1190 = vmatprep.subr.mxu0 0.0
    %1191 = vmatpush1.msra.mxu0 0.0
    %1192 = vmatprep.subr.mxu0 0.0
    %1193 = vmatpush1.msra.mxu0 0.0
    %1194 = vmatprep.subr.mxu0 0.0
    %1195 = vmatpush1.msra.mxu0 0.0
    %1196 = vmatprep.subr.mxu0 0.0
    %1197 = vmatpush1.msra.mxu0 0.0
    %1198 = vmatprep.subr.mxu0 0.0
    %1199 = vmatpush1.msra.mxu0 0.0
    %1200 = vmatprep.subr.mxu0 0.0
    %1201 = vmatpush1.msra.mxu0 0.0
    %1202 = vmatprep.subr.mxu0 0.0
    %1203 = vmatpush1.msra.mxu0 0.0
    %1204 = vmatprep.subr.mxu0 0.0
    %1205 = vmatpush1.msra.mxu0 0.0
    %1206 = vmatprep.subr.mxu0 0.0
    %1207 = vmatpush1.msra.mxu0 0.0
    %1208 = vmatprep.subr.mxu0 0.0
    %1209 = vmatpush1.msra.mxu0 0.0
    %1210 = vmatprep.subr.mxu0 0.0
    %1211 = vmatpush1.msra.mxu0 0.0
    %1212 = vmatprep.subr.mxu0 0.0
    %1213 = vmatpush1.msra.mxu0 0.0
    %1214 = vmatprep.subr.mxu0 0.0
    %1215 = vmatpush1.msra.mxu0 0.0
    %1216 = vmatprep.subr.mxu0 0.0
    %1217 = vmatpush1.msra.mxu0 0.0
    %1218 = vmatprep.subr.mxu0 0.0
    %1219 = vmatpush1.msra.mxu0 0.0
    %1220 = vmatprep.mubr.f32.mxu0 0.0
    %1221 = vmatmul.mubr.f32.gmra.mrb[0].mxu0 %v1151
    %v1222 = vpop.f32.mrb[0].mxu0
    %v1223 = vadd.f32 0.0, %v1222
    %v1224 = vpop.f32.mrb[0].mxu0
    %1225 = vmatprep.mubr.f32.mxu0 0.0
    %1226 = vmatmul.mubr.f32.gmra.mrb[0].mxu0 %v1154
    %v1227 = vpop.f32.mrb[0].mxu0
    %v1228 = vadd.f32 0.0, %v1227
    %v1229 = vpop.f32.mrb[0].mxu0
    %1230 = vdwg.mxu0
    %v1231 = vadd.f32 %v1142, %v1223
    %v1232 = vadd.f32 %v1147, %v1228
    %v1234 = vsel %vm202, %v976, 0
    %v1237 = vsel %vm202, %v981, 0
    %1239 = vmatprep.subr.mxu0 0.0
    %1240 = vmatpush1.msra.mxu0 %v987
    %1241 = vmatprep.subr.mxu0 0.0
    %1242 = vmatpush1.msra.mxu0 0.0
    %1243 = vmatprep.subr.mxu0 0.0
    %1244 = vmatpush1.msra.mxu0 0.0
    %1245 = vmatprep.subr.mxu0 0.0
    %1246 = vmatpush1.msra.mxu0 0.0
    %1247 = vmatprep.subr.mxu0 0.0
    %1248 = vmatpush1.msra.mxu0 0.0
    %1249 = vmatprep.subr.mxu0 0.0
    %1250 = vmatpush1.msra.mxu0 0.0
    %1251 = vmatprep.subr.mxu0 0.0
    %1252 = vmatpush1.msra.mxu0 0.0
    %1253 = vmatprep.subr.mxu0 0.0
    %1254 = vmatpush1.msra.mxu0 0.0
    %1255 = vmatprep.subr.mxu0 0.0
    %1256 = vmatpush1.msra.mxu0 0.0
    %1257 = vmatprep.subr.mxu0 0.0
    %1258 = vmatpush1.msra.mxu0 0.0
    %1259 = vmatprep.subr.mxu0 0.0
    %1260 = vmatpush1.msra.mxu0 0.0
    %1261 = vmatprep.subr.mxu0 0.0
    %1262 = vmatpush1.msra.mxu0 0.0
    %1263 = vmatprep.subr.mxu0 0.0
    %1264 = vmatpush1.msra.mxu0 0.0
    %1265 = vmatprep.subr.mxu0 0.0
    %1266 = vmatpush1.msra.mxu0 0.0
    %1267 = vmatprep.subr.mxu0 0.0
    %1268 = vmatpush1.msra.mxu0 0.0
    %1269 = vmatprep.subr.mxu0 0.0
    %1270 = vmatpush1.msra.mxu0 0.0
    %1271 = vmatprep.subr.mxu0 0.0
    %1272 = vmatpush1.msra.mxu0 0.0
    %1273 = vmatprep.subr.mxu0 0.0
    %1274 = vmatpush1.msra.mxu0 0.0
    %1275 = vmatprep.subr.mxu0 0.0
    %1276 = vmatpush1.msra.mxu0 0.0
    %1277 = vmatprep.subr.mxu0 0.0
    %1278 = vmatpush1.msra.mxu0 0.0
    %1279 = vmatprep.subr.mxu0 0.0
    %1280 = vmatpush1.msra.mxu0 0.0
    %1281 = vmatprep.subr.mxu0 0.0
    %1282 = vmatpush1.msra.mxu0 0.0
    %1283 = vmatprep.subr.mxu0 0.0
    %1284 = vmatpush1.msra.mxu0 0.0
    %1285 = vmatprep.subr.mxu0 0.0
    %1286 = vmatpush1.msra.mxu0 0.0
    %1287 = vmatprep.subr.mxu0 0.0
    %1288 = vmatpush1.msra.mxu0 0.0
    %1289 = vmatprep.subr.mxu0 0.0
    %1290 = vmatpush1.msra.mxu0 0.0
    %1291 = vmatprep.subr.mxu0 0.0
    %1292 = vmatpush1.msra.mxu0 0.0
    %1293 = vmatprep.subr.mxu0 0.0
    %1294 = vmatpush1.msra.mxu0 0.0
    %1295 = vmatprep.subr.mxu0 0.0
    %1296 = vmatpush1.msra.mxu0 0.0
    %1297 = vmatprep.subr.mxu0 0.0
    %1298 = vmatpush1.msra.mxu0 0.0
    %1299 = vmatprep.subr.mxu0 0.0
    %1300 = vmatpush1.msra.mxu0 0.0
    %1301 = vmatprep.subr.mxu0 0.0
    %1302 = vmatpush1.msra.mxu0 0.0
    %1303 = vmatprep.mubr.f32.mxu0 0.0
    %1304 = vmatmul.mubr.f32.gmra.mrb[0].mxu0 %v1234
    %v1305 = vpop.f32.mrb[0].mxu0
    %v1306 = vadd.f32 0.0, %v1305
    %v1307 = vpop.f32.mrb[0].mxu0
    %1308 = vmatprep.mubr.f32.mxu0 0.0
    %1309 = vmatmul.mubr.f32.gmra.mrb[0].mxu0 %v1237
    %v1310 = vpop.f32.mrb[0].mxu0
    %v1311 = vadd.f32 0.0, %v1310
    %v1312 = vpop.f32.mrb[0].mxu0
    %1313 = vdwg.mxu0
    %v1314 = vadd.f32 %v1231, %v1306
    %v1315 = vadd.f32 %v1232, %v1311
    %v1316 = vld [vmem:[%s7] sm:$0x1]
    %v1317 = vld [vmem:[%s7 + $0x1] sm:$0x1]
    %v1318 = vld [vmem:[%s7 + $0x2] sm:$0x1]
    %v1319 = vld [vmem:[%s7 + $0x3] sm:$0x1]
    %v1320 = vld [vmem:[%s7 + $0x4] sm:$0x1]
    %v1321 = vld [vmem:[%s7 + $0x5] sm:$0x1]
    %v1322 = vlaneseq
    %v1323 = vshrl.u32 %v1322, 7
    %v1324 = vsub.s32 0, %v1323
    %v1325 = vrot.slane %v1316, %v1324
    %v1326 = vadd.f32 %v1314, %v1325
    %v1327 = vadd.f32 %v1315, %v1325
    %v1328 = vadd.f32 %v44, %v1326
    %v1329 = vadd.f32 %v45, %v1327
    %v1330 = vsel %vm57, %v1328, 0.0
    %1331 = vadd.xlane.f32.xlu0 %v1330
    %v1332 = vpop.xlane.xlu0 %1331
    %v1333 = vsel %vm57, %v1329, 0.0
    %1334 = vadd.xlane.f32.xlu0 %v1333
    %v1335 = vpop.xlane.xlu0 %1334
    %v1336 = vrcp.pop 32.0
    %v1337 = vmul.f32 %v1332, %v1336
    %v1338 = vmul.f32 %v1335, %v1336
    %v1339 = vsub.f32 %v1328, %v1337
    %v1340 = vsub.f32 %v1329, %v1338
    %v1341 = vmul.f32 %v1339, %v1339
    %v1342 = vmul.f32 %v1340, %v1340
    %v1343 = vsel %vm57, %v1341, 0.0
    %1344 = vadd.xlane.f32.xlu0 %v1343
    %v1345 = vpop.xlane.xlu0 %1344
    %v1346 = vsel %vm57, %v1342, 0.0
    %1347 = vadd.xlane.f32.xlu0 %v1346
    %v1348 = vpop.xlane.xlu0 %1347
    %v1349 = vmul.f32 %v1345, %v1336
    %v1350 = vmul.f32 %v1348, %v1336
    %v1351 = vadd.f32 %v1349, 1e-05
    %v1352 = vadd.f32 %v1350, 1e-05
    %v1353 = vrsqrt.pop %v1351
    %v1354 = vrsqrt.pop %v1352
    %v1355 = vmul.f32 %v1339, %v1353
    %v1356 = vmul.f32 %v1340, %v1354
    %v1357 = vlaneseq
    %v1358 = vshrl.u32 %v1357, 7
    %v1359 = vsub.s32 0, %v1358
    %v1360 = vrot.slane %v1318, %v1359
    %v1361 = vmul.f32 %v1355, %v1360
    %v1362 = vmul.f32 %v1356, %v1360
    %v1363 = vlaneseq
    %v1364 = vshrl.u32 %v1363, 7
    %v1365 = vsub.s32 0, %v1364
    %v1366 = vrot.slane %v1319, %v1365
    %v1367 = vadd.f32 %v1361, %v1366
    %v1368 = vadd.f32 %v1362, %v1366
    %v1369 = vld [vmem:[%s4] sm:$0xff]
    %v1370 = vld [vmem:[%s4 + $0x8] sm:$0xff]
    %v1371 = vld [vmem:[%s4 + $0x10] sm:$0xff]
    %v1372 = vld [vmem:[%s4 + $0x18] sm:$0xff]
    %v1373 = vld [vmem:[%s5] sm:$0x1]
    %v1375 = vlaneseq
    %v1376 = vshrl.u32 %v1375, 7
    %v1377 = vsub.s32 0, %v1376
    %v1378 = vrot.slane %v1373, %v1377
    %v1381 = vsel %vm57, %v1367, 0
    %v1384 = vsel %vm57, %v1368, 0
    %1386 = vmatprep.subr.mxu0 0.0
    %1387 = vmatpush1.msra.mxu0 %v1369
    %1388 = vmatprep.subr.mxu0 0.0
    %1389 = vmatpush1.msra.mxu0 %v1370
    %1390 = vmatprep.subr.mxu0 0.0
    %1391 = vmatpush1.msra.mxu0 %v1371
    %1392 = vmatprep.subr.mxu0 0.0
    %1393 = vmatpush1.msra.mxu0 %v1372
    %1394 = vmatprep.subr.mxu0 0.0
    %1395 = vmatpush1.msra.mxu0 0.0
    %1396 = vmatprep.subr.mxu0 0.0
    %1397 = vmatpush1.msra.mxu0 0.0
    %1398 = vmatprep.subr.mxu0 0.0
    %1399 = vmatpush1.msra.mxu0 0.0
    %1400 = vmatprep.subr.mxu0 0.0
    %1401 = vmatpush1.msra.mxu0 0.0
    %1402 = vmatprep.subr.mxu0 0.0
    %1403 = vmatpush1.msra.mxu0 0.0
    %1404 = vmatprep.subr.mxu0 0.0
    %1405 = vmatpush1.msra.mxu0 0.0
    %1406 = vmatprep.subr.mxu0 0.0
    %1407 = vmatpush1.msra.mxu0 0.0
    %1408 = vmatprep.subr.mxu0 0.0
    %1409 = vmatpush1.msra.mxu0 0.0
    %1410 = vmatprep.subr.mxu0 0.0
    %1411 = vmatpush1.msra.mxu0 0.0
    %1412 = vmatprep.subr.mxu0 0.0
    %1413 = vmatpush1.msra.mxu0 0.0
    %1414 = vmatprep.subr.mxu0 0.0
    %1415 = vmatpush1.msra.mxu0 0.0
    %1416 = vmatprep.subr.mxu0 0.0
    %1417 = vmatpush1.msra.mxu0 0.0
    %1418 = vmatprep.subr.mxu0 0.0
    %1419 = vmatpush1.msra.mxu0 0.0
    %1420 = vmatprep.subr.mxu0 0.0
    %1421 = vmatpush1.msra.mxu0 0.0
    %1422 = vmatprep.subr.mxu0 0.0
    %1423 = vmatpush1.msra.mxu0 0.0
    %1424 = vmatprep.subr.mxu0 0.0
    %1425 = vmatpush1.msra.mxu0 0.0
    %1426 = vmatprep.subr.mxu0 0.0
    %1427 = vmatpush1.msra.mxu0 0.0
    %1428 = vmatprep.subr.mxu0 0.0
    %1429 = vmatpush1.msra.mxu0 0.0
    %1430 = vmatprep.subr.mxu0 0.0
    %1431 = vmatpush1.msra.mxu0 0.0
    %1432 = vmatprep.subr.mxu0 0.0
    %1433 = vmatpush1.msra.mxu0 0.0
    %1434 = vmatprep.subr.mxu0 0.0
    %1435 = vmatpush1.msra.mxu0 0.0
    %1436 = vmatprep.subr.mxu0 0.0
    %1437 = vmatpush1.msra.mxu0 0.0
    %1438 = vmatprep.subr.mxu0 0.0
    %1439 = vmatpush1.msra.mxu0 0.0
    %1440 = vmatprep.subr.mxu0 0.0
    %1441 = vmatpush1.msra.mxu0 0.0
    %1442 = vmatprep.subr.mxu0 0.0
    %1443 = vmatpush1.msra.mxu0 0.0
    %1444 = vmatprep.subr.mxu0 0.0
    %1445 = vmatpush1.msra.mxu0 0.0
    %1446 = vmatprep.subr.mxu0 0.0
    %1447 = vmatpush1.msra.mxu0 0.0
    %1448 = vmatprep.subr.mxu0 0.0
    %1449 = vmatpush1.msra.mxu0 0.0
    %1450 = vmatprep.mubr.f32.mxu0 0.0
    %1451 = vmatmul.mubr.f32.gmra.mrb[0].mxu0 %v1381
    %v1452 = vpop.f32.mrb[0].mxu0
    %v1453 = vadd.f32 %v1378, %v1452
    %v1454 = vpop.f32.mrb[0].mxu0
    %1455 = vmatprep.mubr.f32.mxu0 0.0
    %1456 = vmatmul.mubr.f32.gmra.mrb[0].mxu0 %v1384
    %v1457 = vpop.f32.mrb[0].mxu0
    %v1458 = vadd.f32 %v1378, %v1457
    %v1459 = vpop.f32.mrb[0].mxu0
    %1460 = vdwg.mxu0
    %v1461 = vmax.f32 %v1453, 0.0
    %v1462 = vmax.f32 %v1458, 0.0
    %v1463 = vld [vmem:[%s6] sm:$0xff]
    %v1464 = vld [vmem:[%s6 + $0x8] sm:$0xff]
    %v1465 = vld [vmem:[%s6 + $0x10] sm:$0xff]
    %v1466 = vld [vmem:[%s6 + $0x18] sm:$0xff]
    %v1467 = vld [vmem:[%s6 + $0x20] sm:$0xff]
    %v1468 = vld [vmem:[%s6 + $0x28] sm:$0xff]
    %v1469 = vld [vmem:[%s6 + $0x30] sm:$0xff]
    %v1470 = vld [vmem:[%s6 + $0x38] sm:$0xff]
    %v1471 = vlaneseq
    %v1472 = vshrl.u32 %v1471, 7
    %v1473 = vsub.s32 0, %v1472
    %v1474 = vrot.slane %v1317, %v1473
    %vm1475 = vcmask 523264
    %v1477 = vsel %vm1475, %v1461, 0
    %v1480 = vsel %vm1475, %v1462, 0
    %1482 = vmatprep.subr.mxu0 0.0
    %1483 = vmatpush1.msra.mxu0 %v1463
    %1484 = vmatprep.subr.mxu0 0.0
    %1485 = vmatpush1.msra.mxu0 %v1464
    %1486 = vmatprep.subr.mxu0 0.0
    %1487 = vmatpush1.msra.mxu0 %v1465
    %1488 = vmatprep.subr.mxu0 0.0
    %1489 = vmatpush1.msra.mxu0 %v1466
    %1490 = vmatprep.subr.mxu0 0.0
    %1491 = vmatpush1.msra.mxu0 %v1467
    %1492 = vmatprep.subr.mxu0 0.0
    %1493 = vmatpush1.msra.mxu0 %v1468
    %1494 = vmatprep.subr.mxu0 0.0
    %1495 = vmatpush1.msra.mxu0 %v1469
    %1496 = vmatprep.subr.mxu0 0.0
    %1497 = vmatpush1.msra.mxu0 %v1470
    %1498 = vmatprep.subr.mxu0 0.0
    %1499 = vmatpush1.msra.mxu0 0.0
    %1500 = vmatprep.subr.mxu0 0.0
    %1501 = vmatpush1.msra.mxu0 0.0
    %1502 = vmatprep.subr.mxu0 0.0
    %1503 = vmatpush1.msra.mxu0 0.0
    %1504 = vmatprep.subr.mxu0 0.0
    %1505 = vmatpush1.msra.mxu0 0.0
    %1506 = vmatprep.subr.mxu0 0.0
    %1507 = vmatpush1.msra.mxu0 0.0
    %1508 = vmatprep.subr.mxu0 0.0
    %1509 = vmatpush1.msra.mxu0 0.0
    %1510 = vmatprep.subr.mxu0 0.0
    %1511 = vmatpush1.msra.mxu0 0.0
    %1512 = vmatprep.subr.mxu0 0.0
    %1513 = vmatpush1.msra.mxu0 0.0
    %1514 = vmatprep.subr.mxu0 0.0
    %1515 = vmatpush1.msra.mxu0 0.0
    %1516 = vmatprep.subr.mxu0 0.0
    %1517 = vmatpush1.msra.mxu0 0.0
    %1518 = vmatprep.subr.mxu0 0.0
    %1519 = vmatpush1.msra.mxu0 0.0
    %1520 = vmatprep.subr.mxu0 0.0
    %1521 = vmatpush1.msra.mxu0 0.0
    %1522 = vmatprep.subr.mxu0 0.0
    %1523 = vmatpush1.msra.mxu0 0.0
    %1524 = vmatprep.subr.mxu0 0.0
    %1525 = vmatpush1.msra.mxu0 0.0
    %1526 = vmatprep.subr.mxu0 0.0
    %1527 = vmatpush1.msra.mxu0 0.0
    %1528 = vmatprep.subr.mxu0 0.0
    %1529 = vmatpush1.msra.mxu0 0.0
    %1530 = vmatprep.subr.mxu0 0.0
    %1531 = vmatpush1.msra.mxu0 0.0
    %1532 = vmatprep.subr.mxu0 0.0
    %1533 = vmatpush1.msra.mxu0 0.0
    %1534 = vmatprep.subr.mxu0 0.0
    %1535 = vmatpush1.msra.mxu0 0.0
    %1536 = vmatprep.subr.mxu0 0.0
    %1537 = vmatpush1.msra.mxu0 0.0
    %1538 = vmatprep.subr.mxu0 0.0
    %1539 = vmatpush1.msra.mxu0 0.0
    %1540 = vmatprep.subr.mxu0 0.0
    %1541 = vmatpush1.msra.mxu0 0.0
    %1542 = vmatprep.subr.mxu0 0.0
    %1543 = vmatpush1.msra.mxu0 0.0
    %1544 = vmatprep.subr.mxu0 0.0
    %1545 = vmatpush1.msra.mxu0 0.0
    %1546 = vmatprep.mubr.f32.mxu0 0.0
    %1547 = vmatmul.mubr.f32.gmra.mrb[0].mxu0 %v1477
    %v1548 = vpop.f32.mrb[0].mxu0
    %v1549 = vadd.f32 %v1474, %v1548
    %v1550 = vpop.f32.mrb[0].mxu0
    %1551 = vmatprep.mubr.f32.mxu0 0.0
    %1552 = vmatmul.mubr.f32.gmra.mrb[0].mxu0 %v1480
    %v1553 = vpop.f32.mrb[0].mxu0
    %v1554 = vadd.f32 %v1474, %v1553
    %v1555 = vpop.f32.mrb[0].mxu0
    %1556 = vdwg.mxu0
    %v1557 = vadd.f32 %v1367, %v1549
    %v1558 = vadd.f32 %v1368, %v1554
    %v1559 = vsel %vm57, %v1557, 0.0
    %1560 = vadd.xlane.f32.xlu0 %v1559
    %v1561 = vpop.xlane.xlu0 %1560
    %v1562 = vsel %vm57, %v1558, 0.0
    %1563 = vadd.xlane.f32.xlu0 %v1562
    %v1564 = vpop.xlane.xlu0 %1563
    %v1565 = vmul.f32 %v1561, %v1336
    %v1566 = vmul.f32 %v1564, %v1336
    %v1567 = vsub.f32 %v1557, %v1565
    %v1568 = vsub.f32 %v1558, %v1566
    %v1569 = vmul.f32 %v1567, %v1567
    %v1570 = vmul.f32 %v1568, %v1568
    %v1571 = vsel %vm57, %v1569, 0.0
    %1572 = vadd.xlane.f32.xlu0 %v1571
    %v1573 = vpop.xlane.xlu0 %1572
    %v1574 = vsel %vm57, %v1570, 0.0
    %1575 = vadd.xlane.f32.xlu0 %v1574
    %v1576 = vpop.xlane.xlu0 %1575
    %v1577 = vmul.f32 %v1573, %v1336
    %v1578 = vmul.f32 %v1576, %v1336
    %v1579 = vadd.f32 %v1577, 1e-05
    %v1580 = vadd.f32 %v1578, 1e-05
    %v1581 = vrsqrt.pop %v1579
    %v1582 = vrsqrt.pop %v1580
    %v1583 = vmul.f32 %v1567, %v1581
    %v1584 = vmul.f32 %v1568, %v1582
    %v1585 = vlaneseq
    %v1586 = vshrl.u32 %v1585, 7
    %v1587 = vsub.s32 0, %v1586
    %v1588 = vrot.slane %v1320, %v1587
    %v1589 = vmul.f32 %v1583, %v1588
    %v1590 = vmul.f32 %v1584, %v1588
    %v1591 = vlaneseq
    %v1592 = vshrl.u32 %v1591, 7
    %v1593 = vsub.s32 0, %v1592
    %v1594 = vrot.slane %v1321, %v1593
    %v1595 = vadd.f32 %v1589, %v1594
    %v1596 = vadd.f32 %v1590, %v1594
    %1597 = vst.msk [vmem:[#allocation5] sm:$0xff] %vm57, %v1595
    %1598 = vst.msk [vmem:[#allocation5 + $0x8] sm:$0xff] %vm57, %v1596
    // Predicated region
    $region38: #{tpu_custom_call.1} parent=1 // pred_check
      _
    $region39: #{tpu_custom_call.1} parent=1 // pred_check_branch
      %1600 = sbr.rel (0) target = $region41
    $region40: #{tpu_custom_call.1} parent=1 // pred_region
      %s1602 = ssub.s32 256, 256
      %1603 = vsyncadd [#allocation4], %s1602
      %s1604 = sshll.u32 [#allocation5], 4
      %s1605 = int_to_ptr.vmem [resolvable:$true] %s1604
      %1610 = dma.vmem_to_hbm [thread:$0]  %s1605, 256, %s8, [#allocation4], 128, 128, 8
    $region41: #{tpu_custom_call.1} parent=1 // pred_fallthru
      _
    // Predicated region
    $region42: #{tpu_custom_call.1} parent=1 // pred_check
      _
    $region43: #{tpu_custom_call.1} parent=1 // pred_check_branch
      %1612 = sbr.rel (0) target = $region45
    $region44: #{tpu_custom_call.1} parent=1 // pred_region
      %1613 = dma.done [#allocation4], 256
    $region45: #{tpu_custom_call.1} parent=1 // pred_fallthru
      _
    %1614 = vsyncpa [#allocation3], 1
    %1615 = vsyncpa [#allocation4], 1

</llo_original>
